<compile_context>
chip_gen: v7x
topology: tpu7x:2x2x1
jax: 0.10.0
libtpu: 0.0.40
codegen_flags: <defaults>
</compile_context>

<pallas_src>
import functools

import jax
import jax.numpy as jnp
from jax import lax
from jax.experimental import pallas as pl
from jax.experimental.pallas import tpu as pltpu


def _mha_kernel(x_ref, *refs, nb, seq, hidden, mm_dtype, fused, kv_block):
    """One grid step: nb batch elements, full sequence.

    refs layout: (<qkv weights/biases>, wo, bo, o_ref); depends on `fused`.
    """
    L, H = seq, hidden
    o_ref = refs[-1]
    wo_ref, bo_ref = refs[-3], refs[-2]

    x = x_ref[...]
    D = x.shape[-1]
    # (nb, L, D) -> (nb*L, D): layout-free when L % 8 == 0 (sublane merge).
    xf = x.reshape(nb * L, D).astype(jnp.float32)   # residual kept in f32
    xm = xf.astype(mm_dtype)                        # MXU operand

    if fused:
        # Single (D, 3H) projection; H % 128 == 0 so splits are lane-aligned.
        w_qkv_ref, b_qkv_ref = refs[0], refs[1]
        e = (jnp.dot(xm, w_qkv_ref[...], preferred_element_type=jnp.float32)
             + b_qkv_ref[...])
        q, k, v = e[:, 0:H], e[:, H:2 * H], e[:, 2 * H:3 * H]
    else:
        wq_ref, wk_ref, wv_ref, bq_ref, bk_ref, bv_ref = refs[0:6]
        q = jnp.dot(xm, wq_ref[...], preferred_element_type=jnp.float32) + bq_ref[...]
        k = jnp.dot(xm, wk_ref[...], preferred_element_type=jnp.float32) + bk_ref[...]
        v = jnp.dot(xm, wv_ref[...], preferred_element_type=jnp.float32) + bv_ref[...]

    # bf16 operands for both attention matmuls (accumulation stays f32).
    qb = q.reshape(nb, L, H).astype(mm_dtype)
    kb = k.reshape(nb, L, H).astype(mm_dtype)
    vb = v.reshape(nb, L, H).astype(mm_dtype)

    if L > kv_block:
        # Flash-style online softmax over K/V tiles: never materializes the
        # full (nb, L, L) scores.  Statically unrolled (trip count is static).
        m = jnp.full((nb, L, 1), -jnp.inf, dtype=jnp.float32)
        lsum = jnp.zeros((nb, L, 1), dtype=jnp.float32)
        acc = jnp.zeros((nb, L, H), dtype=jnp.float32)
        for start in range(0, L, kv_block):
            size = min(kv_block, L - start)
            kt = kb[:, start:start + size, :]
            vt = vb[:, start:start + size, :]
            s = lax.dot_general(
                qb, kt, dimension_numbers=(((2,), (2,)), ((0,), (0,))),
                preferred_element_type=jnp.float32)
            m_new = jnp.maximum(m, jnp.max(s, axis=-1, keepdims=True))
            alpha = jnp.exp(m - m_new)
            p = jnp.exp(s - m_new)
            lsum = alpha * lsum + jnp.sum(p, axis=-1, keepdims=True)
            acc = alpha * acc + lax.dot_general(
                p.astype(mm_dtype), vt,
                dimension_numbers=(((2,), (1,)), ((0,), (0,))),
                preferred_element_type=jnp.float32)
            m = m_new
        a = acc * pl.reciprocal(lsum, approx=True)
    else:
        s = lax.dot_general(
            qb, kb, dimension_numbers=(((2,), (2,)), ((0,), (0,))),
            preferred_element_type=jnp.float32)                 # (nb, L, L)
        m = jnp.max(s, axis=-1, keepdims=True)
        p = jnp.exp(s - m)
        lsum = jnp.sum(p, axis=-1, keepdims=True)
        a = lax.dot_general(
            p.astype(mm_dtype), vb,
            dimension_numbers=(((2,), (1,)), ((0,), (0,))),
            preferred_element_type=jnp.float32)                 # (nb, L, H)
        a = a * pl.reciprocal(lsum, approx=True)

    a = a.reshape(nb * L, H)
    # output_fc + residual fused into the single store.
    out = (jnp.dot(a.astype(mm_dtype), wo_ref[...],
                   preferred_element_type=jnp.float32)
           + bo_ref[...] + xf)
    # o_ref is either (nb, L, D) or lane-dense (nb, L*D); reshape handles both.
    o_ref[...] = out.reshape(o_ref.shape).astype(o_ref.dtype)


def prepare_params(w_embed, b_embed, w_out, b_out, *, hidden_features,
                   scaled=True, matmul_dtype=jnp.bfloat16):
    """One-time parameter prep (PyTorch (out, in) layout -> kernel layout).

    w_embed: (3H, D), b_embed: (3H,), w_out: (D, H), b_out: (D,).
    Transposes to (in, out), folds the 1/sqrt(H) scale into the Q projection,
    casts weights to the MXU dtype (biases stay f32).  When H % 128 == 0 the
    QKV weights stay fused (single matmul, lane-aligned splits); otherwise
    they are split to avoid 32-lane-offset activation slicing.
    """
    H = hidden_features
    scale = 1.0 / (H ** 0.5) if scaled else 1.0
    w_embed = jnp.asarray(w_embed, jnp.float32)
    b_embed = jnp.asarray(b_embed, jnp.float32)
    wq = w_embed[0 * H:1 * H].T * scale                      # (D, H)
    wk = w_embed[1 * H:2 * H].T
    wv = w_embed[2 * H:3 * H].T
    bq = b_embed[0 * H:1 * H] * scale
    bk = b_embed[1 * H:2 * H]
    bv = b_embed[2 * H:3 * H]
    wo = jnp.asarray(w_out, jnp.float32).T                   # (H, D)
    bo = jnp.asarray(b_out, jnp.float32).reshape(1, -1)      # (1, D)

    fused = (H % 128 == 0)
    params = dict(fused=fused, hidden=H, wo=wo.astype(matmul_dtype), bo=bo)
    if fused:
        params["w_qkv"] = jnp.concatenate([wq, wk, wv], axis=1).astype(matmul_dtype)
        params["b_qkv"] = jnp.concatenate([bq, bk, bv]).reshape(1, 3 * H)
    else:
        params["wq"] = wq.astype(matmul_dtype)
        params["wk"] = wk.astype(matmul_dtype)
        params["wv"] = wv.astype(matmul_dtype)
        params["bq"] = bq.reshape(1, H)
        params["bk"] = bk.reshape(1, H)
        params["bv"] = bv.reshape(1, H)
    return params


def _vmem_capacity_bytes():
    try:
        return int(pltpu.get_tpu_info().vmem_capacity_bytes)
    except Exception:
        return 64 * 1024 * 1024   # conservative default (v7x per-core VMEM)


def _step_vmem_bytes(nb, seq, in_dim, hidden, kv_block, x_bytes):
    """Rough per-grid-step VMEM footprint (bytes) for the tile picker."""
    f32, bf16 = 4, 2
    rows = nb * seq
    kvt = min(kv_block, seq)
    io = 2 * rows * in_dim * (x_bytes + f32)            # x + out, double-buffered
    weights = 4 * in_dim * hidden * bf16 + (3 * hidden + in_dim) * f32
    qkv = 3 * rows * hidden * (f32 + bf16)              # f32 results + bf16 copies
    scores = 2 * nb * seq * kvt * f32                   # s and p live together
    other = rows * hidden * f32 + rows * in_dim * (f32 + bf16)  # acc, out f32, x bf16
    return io + weights + qkv + scores + other


def _pick_batch_block(n, seq, in_dim, hidden, *, kv_block, vmem_budget,
                      target_rows=512, x_bytes=4):
    """Pick nb (a divisor of n) so that:
       * the estimated per-step live set fits the VMEM budget,
       * the grid has >= 2 steps when possible (v7x: 2 TensorCores),
       * nb*seq reaches ~target_rows flattened rows to fill the MXU.
    """
    divisors = [d for d in range(1, n + 1) if n % d == 0]
    feasible = [d for d in divisors
                if _step_vmem_bytes(d, seq, in_dim, hidden, kv_block, x_bytes)
                <= vmem_budget]
    if not feasible:
        feasible = [1]
    preferred = [d for d in feasible if n // d >= 2] or feasible
    for nb in preferred:
        if nb * seq >= target_rows:
            return nb
    return preferred[-1]


def _const_spec(shape, single_buffer):
    """BlockSpec for an operand identical at every grid step.

    With single_buffer=True the block is single-buffered (pl.Buffered(1)):
    it is fetched once and never changes, so a second pipeline buffer is
    pure VMEM waste.
    """
    index_map = lambda b: (0,) * len(shape)
    if single_buffer:
        try:
            return pl.BlockSpec(shape, index_map, pipeline_mode=pl.Buffered(1))
        except (TypeError, AttributeError):
            pass   # older BlockSpec signature: fall back to default buffering
    return pl.BlockSpec(shape, index_map)


def multihead_attention(x, params, *, kv_block=512, target_rows=512,
                        cast_input=False):
    """x: (N, L, D).  params: output of prepare_params."""
    N, L, D = x.shape
    H = params["hidden"]
    fused = params["fused"]
    mm_dtype = params["wo"].dtype
    out_dtype = x.dtype

    # VMEM-aware budgets: raise the scoped-VMEM limit (defaults are only
    # 16-32 MiB) while leaving ~20% headroom below physical VMEM.
    vmem_cap = _vmem_capacity_bytes()
    vmem_limit = int(vmem_cap * 0.8)
    nb = _pick_batch_block(
        N, L, D, H, kv_block=kv_block,
        vmem_budget=int(vmem_limit * 0.85), target_rows=target_rows,
        x_bytes=2 if cast_input else x.dtype.itemsize)
    grid = (N // nb,)

    if cast_input:
        # Halves HBM->VMEM traffic of the largest streamed tensor; the kernel
        # upcasts to f32 before the residual add.
        x = x.astype(jnp.bfloat16)

    # Lane-dense output when D is lane-masked (<128 / unaligned) but the
    # flattened L*D last dim is a multiple of 128 and stays (8,128)-tileable.
    flatten_out = ((D % 128 != 0) and ((L * D) % 128 == 0)
                   and (nb % 8 == 0 or nb == N))
    if flatten_out:
        out_shape = jax.ShapeDtypeStruct((N, L * D), out_dtype)
        out_spec = pl.BlockSpec((nb, L * D), lambda b: (b, 0))
    else:
        out_shape = jax.ShapeDtypeStruct((N, L, D), out_dtype)
        out_spec = pl.BlockSpec((nb, L, D), lambda b: (b, 0, 0))

    kernel = functools.partial(_mha_kernel, nb=nb, seq=L, hidden=H,
                               mm_dtype=mm_dtype, fused=fused,
                               kv_block=kv_block)

    def build_and_call(single_buffer_weights):
        if fused:
            w_args = [params["w_qkv"], params["b_qkv"]]
            w_specs = [_const_spec((D, 3 * H), single_buffer_weights),
                       _const_spec((1, 3 * H), single_buffer_weights)]
        else:
            w_args = [params["wq"], params["wk"], params["wv"],
                      params["bq"], params["bk"], params["bv"]]
            w_specs = ([_const_spec((D, H), single_buffer_weights) for _ in range(3)]
                       + [_const_spec((1, H), single_buffer_weights) for _ in range(3)])
        w_args += [params["wo"], params["bo"]]
        w_specs += [_const_spec((H, D), single_buffer_weights),
                    _const_spec((1, D), single_buffer_weights)]

        return pl.pallas_call(
            kernel,
            out_shape=out_shape,
            grid_spec=pltpu.PrefetchScalarGridSpec(
                num_scalar_prefetch=0,
                grid=grid,
                in_specs=[pl.BlockSpec((nb, L, D), lambda b: (b, 0, 0))] + w_specs,
                out_specs=out_spec,
            ),
            compiler_params=pltpu.CompilerParams(
                dimension_semantics=("parallel",),
                vmem_limit_bytes=vmem_limit),
        )(x, *w_args)

    try:
        out = build_and_call(True)
    except Exception:
        # pl.Buffered(1) unsupported in this build: retry with default buffering.
        out = build_and_call(False)

    if flatten_out:
        out = out.reshape(N, L, D)
    return out


def _reference(x, w_embed, b_embed, w_out, b_out, hidden):
    # Pure-JAX f32 reference matching the PyTorch forward (num_heads=1).
    e = x @ w_embed.T + b_embed
    q, k, v = jnp.split(e, 3, axis=-1)
    s = jnp.einsum("nld,nmd->nlm", q, k) / (hidden ** 0.5)
    p = jax.nn.softmax(s, axis=-1)
    a = jnp.einsum("nlm,nmd->nld", p, v)
    return a @ w_out.T + b_out + x


if __name__ == "__main__":
    # Module config: in_features = D, hidden_features = None -> D, num_heads = 1
    N, L, D = 2, 8, 32
    H = D

    key = jax.random.PRNGKey(0)
    kx, kwe, kwo = jax.random.split(key, 3)

    x = jax.random.normal(kx, (N, L, D), dtype=jnp.float32)

    # nn.init.normal_(weight, 0, 0.01); bias = 0   (deterministic synthetic init)
    w_embed = 0.01 * jax.random.normal(kwe, (3 * H, D), dtype=jnp.float32)  # (3H, D)
    b_embed = jnp.zeros((3 * H,), dtype=jnp.float32)
    w_out = 0.01 * jax.random.normal(kwo, (D, H), dtype=jnp.float32)        # (D, H)
    b_out = jnp.zeros((D,), dtype=jnp.float32)

    # One-time layout prep (transpose / split-or-fuse / scale-fold / bf16 cast).
    params = prepare_params(w_embed, b_embed, w_out, b_out,
                            hidden_features=H, matmul_dtype=jnp.bfloat16)

    out = multihead_attention(x, params)
    out = jax.block_until_ready(out)

    ref = _reference(x, w_embed, b_embed, w_out, b_out, H)
    assert out.shape == (N, L, D)
    # bf16 MXU operands + approx reciprocal -> slightly looser tolerance.
    assert jnp.allclose(out, ref, atol=2e-3, rtol=2e-3), \
        float(jnp.max(jnp.abs(out - ref)))

    print("KERNEL_OK")
</pallas_src>

<mosaic_0001>
module attributes {stable_mosaic.version = 11 : i64} {
  func.func @_mha_kernel(%arg0: i32, %arg1: memref<1x8x32xf32, #tpu.memory_space<vmem>>, %arg2: memref<32x32xbf16, #tpu.memory_space<vmem>>, %arg3: memref<32x32xbf16, #tpu.memory_space<vmem>>, %arg4: memref<32x32xbf16, #tpu.memory_space<vmem>>, %arg5: memref<1x32xf32, #tpu.memory_space<vmem>>, %arg6: memref<1x32xf32, #tpu.memory_space<vmem>>, %arg7: memref<1x32xf32, #tpu.memory_space<vmem>>, %arg8: memref<32x32xbf16, #tpu.memory_space<vmem>>, %arg9: memref<1x32xf32, #tpu.memory_space<vmem>>, %arg10: memref<1x8x32xf32, #tpu.memory_space<vmem>>) attributes {dimension_semantics = [#tpu.dimension_semantics<parallel>], iteration_bounds = array<i64: 2>, scalar_prefetch = 0 : i64, scratch_operands = 0 : i64, tpu.core_type = #tpu.core_type<tc>, window_params = [{transform_indices = @transform_0, window_bounds = array<i64: 1, 8, 32>}, {pipeline_mode = #tpu.pipeline_mode<synchronous>, transform_indices = @transform_1, window_bounds = array<i64: 32, 32>}, {pipeline_mode = #tpu.pipeline_mode<synchronous>, transform_indices = @transform_2, window_bounds = array<i64: 32, 32>}, {pipeline_mode = #tpu.pipeline_mode<synchronous>, transform_indices = @transform_3, window_bounds = array<i64: 32, 32>}, {pipeline_mode = #tpu.pipeline_mode<synchronous>, transform_indices = @transform_4, window_bounds = array<i64: 1, 32>}, {pipeline_mode = #tpu.pipeline_mode<synchronous>, transform_indices = @transform_5, window_bounds = array<i64: 1, 32>}, {pipeline_mode = #tpu.pipeline_mode<synchronous>, transform_indices = @transform_6, window_bounds = array<i64: 1, 32>}, {pipeline_mode = #tpu.pipeline_mode<synchronous>, transform_indices = @transform_7, window_bounds = array<i64: 32, 32>}, {pipeline_mode = #tpu.pipeline_mode<synchronous>, transform_indices = @transform_8, window_bounds = array<i64: 1, 32>}, {transform_indices = @transform_9, window_bounds = array<i64: 1, 8, 32>}]} {
    %c0 = arith.constant 0 : index
    %c0_0 = arith.constant 0 : index
    %c0_1 = arith.constant 0 : index
    %0 = vector.load %arg1[%c0, %c0_0, %c0_1] : memref<1x8x32xf32, #tpu.memory_space<vmem>>, vector<1x8x32xf32>
    %1 = vector.shape_cast %0 : vector<1x8x32xf32> to vector<8x32xf32>
    %2 = arith.truncf %1 : vector<8x32xf32> to vector<8x32xbf16>
    %c0_2 = arith.constant 0 : index
    %c0_3 = arith.constant 0 : index
    %3 = vector.load %arg2[%c0_2, %c0_3] : memref<32x32xbf16, #tpu.memory_space<vmem>>, vector<32x32xbf16>
    %cst = arith.constant dense<0.000000e+00> : vector<8x32xf32>
    %4 = tpu.matmul %2, %3, %cst {dimension_numbers = #tpu.dot_dimension_numbers<[1], [0], [0], [1], [0, 0, 1, 1], [], []>} : vector<8x32xbf16>, vector<32x32xbf16>, vector<8x32xf32> -> vector<8x32xf32>
    %c0_4 = arith.constant 0 : index
    %c0_5 = arith.constant 0 : index
    %5 = vector.load %arg5[%c0_4, %c0_5] : memref<1x32xf32, #tpu.memory_space<vmem>>, vector<1x32xf32>
    %6 = vector.broadcast %5 : vector<1x32xf32> to vector<8x32xf32>
    %7 = arith.addf %4, %6 : vector<8x32xf32>
    %c0_6 = arith.constant 0 : index
    %c0_7 = arith.constant 0 : index
    %8 = vector.load %arg3[%c0_6, %c0_7] : memref<32x32xbf16, #tpu.memory_space<vmem>>, vector<32x32xbf16>
    %cst_8 = arith.constant dense<0.000000e+00> : vector<8x32xf32>
    %9 = tpu.matmul %2, %8, %cst_8 {dimension_numbers = #tpu.dot_dimension_numbers<[1], [0], [0], [1], [0, 0, 1, 1], [], []>} : vector<8x32xbf16>, vector<32x32xbf16>, vector<8x32xf32> -> vector<8x32xf32>
    %c0_9 = arith.constant 0 : index
    %c0_10 = arith.constant 0 : index
    %10 = vector.load %arg6[%c0_9, %c0_10] : memref<1x32xf32, #tpu.memory_space<vmem>>, vector<1x32xf32>
    %11 = vector.broadcast %10 : vector<1x32xf32> to vector<8x32xf32>
    %12 = arith.addf %9, %11 : vector<8x32xf32>
    %c0_11 = arith.constant 0 : index
    %c0_12 = arith.constant 0 : index
    %13 = vector.load %arg4[%c0_11, %c0_12] : memref<32x32xbf16, #tpu.memory_space<vmem>>, vector<32x32xbf16>
    %cst_13 = arith.constant dense<0.000000e+00> : vector<8x32xf32>
    %14 = tpu.matmul %2, %13, %cst_13 {dimension_numbers = #tpu.dot_dimension_numbers<[1], [0], [0], [1], [0, 0, 1, 1], [], []>} : vector<8x32xbf16>, vector<32x32xbf16>, vector<8x32xf32> -> vector<8x32xf32>
    %c0_14 = arith.constant 0 : index
    %c0_15 = arith.constant 0 : index
    %15 = vector.load %arg7[%c0_14, %c0_15] : memref<1x32xf32, #tpu.memory_space<vmem>>, vector<1x32xf32>
    %16 = vector.broadcast %15 : vector<1x32xf32> to vector<8x32xf32>
    %17 = arith.addf %14, %16 : vector<8x32xf32>
    %18 = vector.shape_cast %7 : vector<8x32xf32> to vector<1x8x32xf32>
    %19 = arith.truncf %18 : vector<1x8x32xf32> to vector<1x8x32xbf16>
    %20 = vector.shape_cast %12 : vector<8x32xf32> to vector<1x8x32xf32>
    %21 = arith.truncf %20 : vector<1x8x32xf32> to vector<1x8x32xbf16>
    %22 = vector.shape_cast %17 : vector<8x32xf32> to vector<1x8x32xf32>
    %23 = arith.truncf %22 : vector<1x8x32xf32> to vector<1x8x32xbf16>
    %cst_16 = arith.constant dense<0.000000e+00> : vector<1x8x8xf32>
    %24 = tpu.matmul %19, %21, %cst_16 {dimension_numbers = #tpu.dot_dimension_numbers<[2], [2], [1], [1], [0, 0, 0, 1, 1, 1], [0], [0]>} : vector<1x8x32xbf16>, vector<1x8x32xbf16>, vector<1x8x8xf32> -> vector<1x8x8xf32>
    %cst_17 = arith.constant dense<0xFF800000> : vector<1x8xf32>
    %25 = vector.multi_reduction <maximumf>, %24, %cst_17 [2] : vector<1x8x8xf32> to vector<1x8xf32>
    %26 = vector.shape_cast %25 : vector<1x8xf32> to vector<1x8x1xf32>
    %27 = vector.broadcast %26 : vector<1x8x1xf32> to vector<1x8x8xf32>
    %28 = arith.subf %24, %27 : vector<1x8x8xf32>
    %29 = math.exp %28 : vector<1x8x8xf32>
    %cst_18 = arith.constant dense<0.000000e+00> : vector<1x8xf32>
    %30 = vector.multi_reduction <add>, %29, %cst_18 [2] : vector<1x8x8xf32> to vector<1x8xf32>
    %31 = vector.shape_cast %30 : vector<1x8xf32> to vector<1x8x1xf32>
    %32 = arith.truncf %29 : vector<1x8x8xf32> to vector<1x8x8xbf16>
    %cst_19 = arith.constant dense<0.000000e+00> : vector<1x8x32xf32>
    %33 = tpu.matmul %32, %23, %cst_19 {dimension_numbers = #tpu.dot_dimension_numbers<[2], [1], [1], [2], [0, 0, 0, 1, 1, 2], [0], [0]>} : vector<1x8x8xbf16>, vector<1x8x32xbf16>, vector<1x8x32xf32> -> vector<1x8x32xf32>
    %34 = tpu.reciprocal %31 {approx = true} : vector<1x8x1xf32> -> vector<1x8x1xf32>
    %35 = vector.broadcast %34 : vector<1x8x1xf32> to vector<1x8x32xf32>
    %36 = arith.mulf %33, %35 : vector<1x8x32xf32>
    %37 = vector.shape_cast %36 : vector<1x8x32xf32> to vector<8x32xf32>
    %38 = arith.truncf %37 : vector<8x32xf32> to vector<8x32xbf16>
    %c0_20 = arith.constant 0 : index
    %c0_21 = arith.constant 0 : index
    %39 = vector.load %arg8[%c0_20, %c0_21] : memref<32x32xbf16, #tpu.memory_space<vmem>>, vector<32x32xbf16>
    %cst_22 = arith.constant dense<0.000000e+00> : vector<8x32xf32>
    %40 = tpu.matmul %38, %39, %cst_22 {dimension_numbers = #tpu.dot_dimension_numbers<[1], [0], [0], [1], [0, 0, 1, 1], [], []>} : vector<8x32xbf16>, vector<32x32xbf16>, vector<8x32xf32> -> vector<8x32xf32>
    %c0_23 = arith.constant 0 : index
    %c0_24 = arith.constant 0 : index
    %41 = vector.load %arg9[%c0_23, %c0_24] : memref<1x32xf32, #tpu.memory_space<vmem>>, vector<1x32xf32>
    %42 = vector.broadcast %41 : vector<1x32xf32> to vector<8x32xf32>
    %43 = arith.addf %40, %42 : vector<8x32xf32>
    %44 = arith.addf %43, %1 : vector<8x32xf32>
    %45 = vector.shape_cast %44 : vector<8x32xf32> to vector<1x8x32xf32>
    %c0_25 = arith.constant 0 : index
    %c0_26 = arith.constant 0 : index
    %c0_27 = arith.constant 0 : index
    %46 = vector.load %arg10[%c0_25, %c0_26, %c0_27] : memref<1x8x32xf32, #tpu.memory_space<vmem>>, vector<1x8x32xf32>
    tpu.vector_store %arg10[%c0_25, %c0_26, %c0_27], %45 {strides = array<i32>} : memref<1x8x32xf32, #tpu.memory_space<vmem>>, vector<1x8x32xf32>,
    return
  }
  func.func @transform_0(%arg0: i32) -> (i32, i32, i32) {
    %c0_i32 = arith.constant 0 : i32
    %c0_i32_0 = arith.constant 0 : i32
    %c0_i32_1 = arith.constant 0 : i32
    return %arg0, %c0_i32, %c0_i32_0 : i32, i32, i32
  }
  func.func @transform_1(%arg0: i32) -> (i32, i32) {
    %c0_i32 = arith.constant 0 : i32
    %c0_i32_0 = arith.constant 0 : i32
    %c0_i32_1 = arith.constant 0 : i32
    return %c0_i32, %c0_i32_0 : i32, i32
  }
  func.func @transform_2(%arg0: i32) -> (i32, i32) {
    %c0_i32 = arith.constant 0 : i32
    %c0_i32_0 = arith.constant 0 : i32
    %c0_i32_1 = arith.constant 0 : i32
    return %c0_i32, %c0_i32_0 : i32, i32
  }
  func.func @transform_3(%arg0: i32) -> (i32, i32) {
    %c0_i32 = arith.constant 0 : i32
    %c0_i32_0 = arith.constant 0 : i32
    %c0_i32_1 = arith.constant 0 : i32
    return %c0_i32, %c0_i32_0 : i32, i32
  }
  func.func @transform_4(%arg0: i32) -> (i32, i32) {
    %c0_i32 = arith.constant 0 : i32
    %c0_i32_0 = arith.constant 0 : i32
    %c0_i32_1 = arith.constant 0 : i32
    return %c0_i32, %c0_i32_0 : i32, i32
  }
  func.func @transform_5(%arg0: i32) -> (i32, i32) {
    %c0_i32 = arith.constant 0 : i32
    %c0_i32_0 = arith.constant 0 : i32
    %c0_i32_1 = arith.constant 0 : i32
    return %c0_i32, %c0_i32_0 : i32, i32
  }
  func.func @transform_6(%arg0: i32) -> (i32, i32) {
    %c0_i32 = arith.constant 0 : i32
    %c0_i32_0 = arith.constant 0 : i32
    %c0_i32_1 = arith.constant 0 : i32
    return %c0_i32, %c0_i32_0 : i32, i32
  }
  func.func @transform_7(%arg0: i32) -> (i32, i32) {
    %c0_i32 = arith.constant 0 : i32
    %c0_i32_0 = arith.constant 0 : i32
    %c0_i32_1 = arith.constant 0 : i32
    return %c0_i32, %c0_i32_0 : i32, i32
  }
  func.func @transform_8(%arg0: i32) -> (i32, i32) {
    %c0_i32 = arith.constant 0 : i32
    %c0_i32_0 = arith.constant 0 : i32
    %c0_i32_1 = arith.constant 0 : i32
    return %c0_i32, %c0_i32_0 : i32, i32
  }
  func.func @transform_9(%arg0: i32) -> (i32, i32, i32) {
    %c0_i32 = arith.constant 0 : i32
    %c0_i32_0 = arith.constant 0 : i32
    %c0_i32_1 = arith.constant 0 : i32
    return %arg0, %c0_i32, %c0_i32_0 : i32, i32, i32
  }
}

module attributes {stable_mosaic.version = 11 : i64} {
  func.func @_mha_kernel(%arg0: i32, %arg1: memref<1x8x32xf32, #tpu.memory_space<vmem>>, %arg2: memref<32x32xbf16, #tpu.memory_space<vmem>>, %arg3: memref<32x32xbf16, #tpu.memory_space<vmem>>, %arg4: memref<32x32xbf16, #tpu.memory_space<vmem>>, %arg5: memref<1x32xf32, #tpu.memory_space<vmem>>, %arg6: memref<1x32xf32, #tpu.memory_space<vmem>>, %arg7: memref<1x32xf32, #tpu.memory_space<vmem>>, %arg8: memref<32x32xbf16, #tpu.memory_space<vmem>>, %arg9: memref<1x32xf32, #tpu.memory_space<vmem>>, %arg10: memref<1x8x32xf32, #tpu.memory_space<vmem>>) attributes {dimension_semantics = [#tpu.dimension_semantics<parallel>], iteration_bounds = array<i64: 2>, scalar_prefetch = 0 : i64, scratch_operands = 0 : i64, tpu.core_type = #tpu.core_type<tc>, window_params = [{transform_indices = @transform_0, window_bounds = array<i64: 1, 8, 32>}, {pipeline_mode = #tpu.pipeline_mode<synchronous>, transform_indices = @transform_1, window_bounds = array<i64: 32, 32>}, {pipeline_mode = #tpu.pipeline_mode<synchronous>, transform_indices = @transform_2, window_bounds = array<i64: 32, 32>}, {pipeline_mode = #tpu.pipeline_mode<synchronous>, transform_indices = @transform_3, window_bounds = array<i64: 32, 32>}, {pipeline_mode = #tpu.pipeline_mode<synchronous>, transform_indices = @transform_4, window_bounds = array<i64: 1, 32>}, {pipeline_mode = #tpu.pipeline_mode<synchronous>, transform_indices = @transform_5, window_bounds = array<i64: 1, 32>}, {pipeline_mode = #tpu.pipeline_mode<synchronous>, transform_indices = @transform_6, window_bounds = array<i64: 1, 32>}, {pipeline_mode = #tpu.pipeline_mode<synchronous>, transform_indices = @transform_7, window_bounds = array<i64: 32, 32>}, {pipeline_mode = #tpu.pipeline_mode<synchronous>, transform_indices = @transform_8, window_bounds = array<i64: 1, 32>}, {transform_indices = @transform_9, window_bounds = array<i64: 1, 8, 32>}]} {
    %c0 = arith.constant 0 : index
    %c0_0 = arith.constant 0 : index
    %c0_1 = arith.constant 0 : index
    %0 = vector.load %arg1[%c0, %c0_0, %c0_1] : memref<1x8x32xf32, #tpu.memory_space<vmem>>, vector<1x8x32xf32>
    %1 = vector.shape_cast %0 : vector<1x8x32xf32> to vector<8x32xf32>
    %2 = arith.truncf %1 : vector<8x32xf32> to vector<8x32xbf16>
    %c0_2 = arith.constant 0 : index
    %c0_3 = arith.constant 0 : index
    %3 = vector.load %arg2[%c0_2, %c0_3] : memref<32x32xbf16, #tpu.memory_space<vmem>>, vector<32x32xbf16>
    %cst = arith.constant dense<0.000000e+00> : vector<8x32xf32>
    %4 = tpu.matmul %2, %3, %cst {dimension_numbers = #tpu.dot_dimension_numbers<[1], [0], [0], [1], [0, 0, 1, 1], [], []>} : vector<8x32xbf16>, vector<32x32xbf16>, vector<8x32xf32> -> vector<8x32xf32>
    %c0_4 = arith.constant 0 : index
    %c0_5 = arith.constant 0 : index
    %5 = vector.load %arg5[%c0_4, %c0_5] : memref<1x32xf32, #tpu.memory_space<vmem>>, vector<1x32xf32>
    %6 = vector.broadcast %5 : vector<1x32xf32> to vector<8x32xf32>
    %7 = arith.addf %4, %6 : vector<8x32xf32>
    %c0_6 = arith.constant 0 : index
    %c0_7 = arith.constant 0 : index
    %8 = vector.load %arg3[%c0_6, %c0_7] : memref<32x32xbf16, #tpu.memory_space<vmem>>, vector<32x32xbf16>
    %cst_8 = arith.constant dense<0.000000e+00> : vector<8x32xf32>
    %9 = tpu.matmul %2, %8, %cst_8 {dimension_numbers = #tpu.dot_dimension_numbers<[1], [0], [0], [1], [0, 0, 1, 1], [], []>} : vector<8x32xbf16>, vector<32x32xbf16>, vector<8x32xf32> -> vector<8x32xf32>
    %c0_9 = arith.constant 0 : index
    %c0_10 = arith.constant 0 : index
    %10 = vector.load %arg6[%c0_9, %c0_10] : memref<1x32xf32, #tpu.memory_space<vmem>>, vector<1x32xf32>
    %11 = vector.broadcast %10 : vector<1x32xf32> to vector<8x32xf32>
    %12 = arith.addf %9, %11 : vector<8x32xf32>
    %c0_11 = arith.constant 0 : index
    %c0_12 = arith.constant 0 : index
    %13 = vector.load %arg4[%c0_11, %c0_12] : memref<32x32xbf16, #tpu.memory_space<vmem>>, vector<32x32xbf16>
    %cst_13 = arith.constant dense<0.000000e+00> : vector<8x32xf32>
    %14 = tpu.matmul %2, %13, %cst_13 {dimension_numbers = #tpu.dot_dimension_numbers<[1], [0], [0], [1], [0, 0, 1, 1], [], []>} : vector<8x32xbf16>, vector<32x32xbf16>, vector<8x32xf32> -> vector<8x32xf32>
    %c0_14 = arith.constant 0 : index
    %c0_15 = arith.constant 0 : index
    %15 = vector.load %arg7[%c0_14, %c0_15] : memref<1x32xf32, #tpu.memory_space<vmem>>, vector<1x32xf32>
    %16 = vector.broadcast %15 : vector<1x32xf32> to vector<8x32xf32>
    %17 = arith.addf %14, %16 : vector<8x32xf32>
    %18 = vector.shape_cast %7 : vector<8x32xf32> to vector<1x8x32xf32>
    %19 = arith.truncf %18 : vector<1x8x32xf32> to vector<1x8x32xbf16>
    %20 = vector.shape_cast %12 : vector<8x32xf32> to vector<1x8x32xf32>
    %21 = arith.truncf %20 : vector<1x8x32xf32> to vector<1x8x32xbf16>
    %22 = vector.shape_cast %17 : vector<8x32xf32> to vector<1x8x32xf32>
    %23 = arith.truncf %22 : vector<1x8x32xf32> to vector<1x8x32xbf16>
    %cst_16 = arith.constant dense<0.000000e+00> : vector<1x8x8xf32>
    %24 = tpu.matmul %19, %21, %cst_16 {dimension_numbers = #tpu.dot_dimension_numbers<[2], [2], [1], [1], [0, 0, 0, 1, 1, 1], [0], [0]>} : vector<1x8x32xbf16>, vector<1x8x32xbf16>, vector<1x8x8xf32> -> vector<1x8x8xf32>
    %cst_17 = arith.constant dense<0xFF800000> : vector<1x8xf32>
    %25 = vector.multi_reduction <maximumf>, %24, %cst_17 [2] : vector<1x8x8xf32> to vector<1x8xf32>
    %26 = vector.shape_cast %25 : vector<1x8xf32> to vector<1x8x1xf32>
    %27 = vector.broadcast %26 : vector<1x8x1xf32> to vector<1x8x8xf32>
    %28 = arith.subf %24, %27 : vector<1x8x8xf32>
    %29 = math.exp %28 : vector<1x8x8xf32>
    %cst_18 = arith.constant dense<0.000000e+00> : vector<1x8xf32>
    %30 = vector.multi_reduction <add>, %29, %cst_18 [2] : vector<1x8x8xf32> to vector<1x8xf32>
    %31 = vector.shape_cast %30 : vector<1x8xf32> to vector<1x8x1xf32>
    %32 = arith.truncf %29 : vector<1x8x8xf32> to vector<1x8x8xbf16>
    %cst_19 = arith.constant dense<0.000000e+00> : vector<1x8x32xf32>
    %33 = tpu.matmul %32, %23, %cst_19 {dimension_numbers = #tpu.dot_dimension_numbers<[2], [1], [1], [2], [0, 0, 0, 1, 1, 2], [0], [0]>} : vector<1x8x8xbf16>, vector<1x8x32xbf16>, vector<1x8x32xf32> -> vector<1x8x32xf32>
    %34 = tpu.reciprocal %31 {approx = true} : vector<1x8x1xf32> -> vector<1x8x1xf32>
    %35 = vector.broadcast %34 : vector<1x8x1xf32> to vector<1x8x32xf32>
    %36 = arith.mulf %33, %35 : vector<1x8x32xf32>
    %37 = vector.shape_cast %36 : vector<1x8x32xf32> to vector<8x32xf32>
    %38 = arith.truncf %37 : vector<8x32xf32> to vector<8x32xbf16>
    %c0_20 = arith.constant 0 : index
    %c0_21 = arith.constant 0 : index
    %39 = vector.load %arg8[%c0_20, %c0_21] : memref<32x32xbf16, #tpu.memory_space<vmem>>, vector<32x32xbf16>
    %cst_22 = arith.constant dense<0.000000e+00> : vector<8x32xf32>
    %40 = tpu.matmul %38, %39, %cst_22 {dimension_numbers = #tpu.dot_dimension_numbers<[1], [0], [0], [1], [0, 0, 1, 1], [], []>} : vector<8x32xbf16>, vector<32x32xbf16>, vector<8x32xf32> -> vector<8x32xf32>
    %c0_23 = arith.constant 0 : index
    %c0_24 = arith.constant 0 : index
    %41 = vector.load %arg9[%c0_23, %c0_24] : memref<1x32xf32, #tpu.memory_space<vmem>>, vector<1x32xf32>
    %42 = vector.broadcast %41 : vector<1x32xf32> to vector<8x32xf32>
    %43 = arith.addf %40, %42 : vector<8x32xf32>
    %44 = arith.addf %43, %1 : vector<8x32xf32>
    %45 = vector.shape_cast %44 : vector<8x32xf32> to vector<1x8x32xf32>
    %c0_25 = arith.constant 0 : index
    %c0_26 = arith.constant 0 : index
    %c0_27 = arith.constant 0 : index
    %46 = vector.load %arg10[%c0_25, %c0_26, %c0_27] : memref<1x8x32xf32, #tpu.memory_space<vmem>>, vector<1x8x32xf32>
    tpu.vector_store %arg10[%c0_25, %c0_26, %c0_27], %45 {strides = array<i32>} : memref<1x8x32xf32, #tpu.memory_space<vmem>>, vector<1x8x32xf32>,
    return
  }
  func.func @transform_0(%arg0: i32) -> (i32, i32, i32) {
    %c0_i32 = arith.constant 0 : i32
    %c0_i32_0 = arith.constant 0 : i32
    %c0_i32_1 = arith.constant 0 : i32
    return %arg0, %c0_i32, %c0_i32_0 : i32, i32, i32
  }
  func.func @transform_1(%arg0: i32) -> (i32, i32) {
    %c0_i32 = arith.constant 0 : i32
    %c0_i32_0 = arith.constant 0 : i32
    %c0_i32_1 = arith.constant 0 : i32
    return %c0_i32, %c0_i32_0 : i32, i32
  }
  func.func @transform_2(%arg0: i32) -> (i32, i32) {
    %c0_i32 = arith.constant 0 : i32
    %c0_i32_0 = arith.constant 0 : i32
    %c0_i32_1 = arith.constant 0 : i32
    return %c0_i32, %c0_i32_0 : i32, i32
  }
  func.func @transform_3(%arg0: i32) -> (i32, i32) {
    %c0_i32 = arith.constant 0 : i32
    %c0_i32_0 = arith.constant 0 : i32
    %c0_i32_1 = arith.constant 0 : i32
    return %c0_i32, %c0_i32_0 : i32, i32
  }
  func.func @transform_4(%arg0: i32) -> (i32, i32) {
    %c0_i32 = arith.constant 0 : i32
    %c0_i32_0 = arith.constant 0 : i32
    %c0_i32_1 = arith.constant 0 : i32
    return %c0_i32, %c0_i32_0 : i32, i32
  }
  func.func @transform_5(%arg0: i32) -> (i32, i32) {
    %c0_i32 = arith.constant 0 : i32
    %c0_i32_0 = arith.constant 0 : i32
    %c0_i32_1 = arith.constant 0 : i32
    return %c0_i32, %c0_i32_0 : i32, i32
  }
  func.func @transform_6(%arg0: i32) -> (i32, i32) {
    %c0_i32 = arith.constant 0 : i32
    %c0_i32_0 = arith.constant 0 : i32
    %c0_i32_1 = arith.constant 0 : i32
    return %c0_i32, %c0_i32_0 : i32, i32
  }
  func.func @transform_7(%arg0: i32) -> (i32, i32) {
    %c0_i32 = arith.constant 0 : i32
    %c0_i32_0 = arith.constant 0 : i32
    %c0_i32_1 = arith.constant 0 : i32
    return %c0_i32, %c0_i32_0 : i32, i32
  }
  func.func @transform_8(%arg0: i32) -> (i32, i32) {
    %c0_i32 = arith.constant 0 : i32
    %c0_i32_0 = arith.constant 0 : i32
    %c0_i32_1 = arith.constant 0 : i32
    return %c0_i32, %c0_i32_0 : i32, i32
  }
  func.func @transform_9(%arg0: i32) -> (i32, i32, i32) {
    %c0_i32 = arith.constant 0 : i32
    %c0_i32_0 = arith.constant 0 : i32
    %c0_i32_1 = arith.constant 0 : i32
    return %arg0, %c0_i32, %c0_i32_0 : i32, i32, i32
  }
}

</mosaic_0001>

<llo_original>
// kernel: tpu_custom_call.1
$region0: #{tpu_custom_call.1}
  #allocation0 [shape = 'u32[]', space=smem, size = 0x4, offset = 0x4, fixed_abs, tag = 'smem constant byte address 0x4 - core index']
  #allocation1 [shape = 'u32[144,128]{1,0:T(1,128)}', space=vmem, size = 0x12000, scoped, tag = 'internal scratch']
  %s0 = inlined_call_operand.hbm [shape: f32[2,8,32], index: 0, kind: input, shape index: {}]
  %s1 = inlined_call_operand.hbm [shape: bf16[32,32], index: 1, kind: input, shape index: {}]
  %s2 = inlined_call_operand.hbm [shape: bf16[32,32], index: 2, kind: input, shape index: {}]
  %s3 = inlined_call_operand.hbm [shape: bf16[32,32], index: 3, kind: input, shape index: {}]
  %s4 = inlined_call_operand.vmem [shape: f32[1,32], index: 4, kind: input, shape index: {}]
  %s5 = inlined_call_operand.vmem [shape: f32[1,32], index: 5, kind: input, shape index: {}]
  %s6 = inlined_call_operand.vmem [shape: f32[1,32], index: 6, kind: input, shape index: {}]
  %s7 = inlined_call_operand.vmem [shape: bf16[32,32], index: 7, kind: input, shape index: {}]
  %s8 = inlined_call_operand.vmem [shape: f32[1,32], index: 8, kind: input, shape index: {}]
  %s9 = inlined_call_operand.hbm [shape: f32[2,8,32], index: 9, kind: output, shape index: {}]
  %s10 = sld [smem:[#allocation0]]
  $region85: #{tpu_custom_call.1} parent=0
    _
  %s12 = ssub.s32 1, %s10
  %s13 = scalar_select 0, %s12, %s10
  $region1: #{tpu_custom_call.1} parent=0
    #allocation2 [shape = 'u8[8192]{0}', space=vmem, size = 0x2000, scoped, tag = 'input window, operand 0']
    #allocation3 [shape = 's32[2]{0}', space=sflag, size = 0x8, scoped, tag = 'scoped memory for tpu_custom_call.1']
    #allocation4 [shape = 's32[2]{0}', space=sflag, size = 0x8, scoped, tag = 'scoped memory for tpu_custom_call.1']
    #allocation5 [shape = 'u8[8192]{0}', space=vmem, size = 0x2000, scoped, tag = 'input window, operand 1, single buffered']
    #allocation6 [shape = 's32[1]{0}', space=sflag, size = 0x4, scoped, tag = 'scoped memory for tpu_custom_call.1']
    #allocation7 [shape = 'u8[8192]{0}', space=vmem, size = 0x2000, scoped, tag = 'input window, operand 2, single buffered']
    #allocation8 [shape = 'u8[8192]{0}', space=vmem, size = 0x2000, scoped, tag = 'input window, operand 3, single buffered']
    #allocation9 [shape = 's32[1]{0}', space=sflag, size = 0x4, scoped, tag = 'scoped memory for tpu_custom_call.1']
    #allocation10 [shape = 'u8[8192]{0}', space=vmem, size = 0x2000, scoped, tag = 'output window, operand 0']
    %14 = vsyncpa [#allocation3], 0
    %s15 = scalar_lea.sflag [#allocation3], 1
    %16 = vsyncpa %s15, 0
    %17 = vsyncpa [#allocation6], 0
    %18 = vsyncpa [#allocation9], 0
    %19 = vsyncpa [#allocation4], 0
    %s20 = scalar_lea.sflag [#allocation4], 1
    %21 = vsyncpa %s20, 0
    loop: start=0, step=1, limit=4
    $region2: #{tpu_custom_call.1} parent=1 // loop_pre_header
      _
    $region3: #{tpu_custom_call.1} parent=1 // loop_header
      %s23 = sphi 0, %s27
      %p24 = scmp.ge.s32.totalorder %s23, 4
      %s33 = sphi 0, %s35
      %s36 = sphi 0, %s33
      %s37 = sphi 0, %s36
      %s53 = sphi 0, %s37
      %s57 = sphi 0, %s57
      %s59 = sphi 0, %s57
      %s60 = sphi 0, %s59
      %s74 = sphi 0, %s60
      %s78 = sphi 0, %s78
      %s80 = sphi 0, %s78
      %s81 = sphi 0, %s80
      %s95 = sphi 0, %s81
      %s99 = sphi 0, %s99
      %s101 = sphi 0, %s99
      %s102 = sphi 0, %s101
      %s116 = sphi 0, %s102
      %s120 = sphi 0, %s120
      %s122 = sphi 0, %s120
      %s123 = sphi 0, %s122
      %s137 = sphi 0, %s123
      %s141 = sphi 0, %s141
      %s143 = sphi 0, %s141
      %s144 = sphi 0, %s143
      %s158 = sphi 0, %s144
      %s162 = sphi 0, %s162
      %s164 = sphi 0, %s162
      %s165 = sphi 0, %s164
      %s179 = sphi 0, %s165
      %s183 = sphi 0, %s183
      %s185 = sphi 0, %s183
      %s186 = sphi 0, %s185
      %s200 = sphi 0, %s186
      %s204 = sphi 0, %s204
      %s206 = sphi 0, %s204
      %s207 = sphi 0, %s206
      %s221 = sphi 0, %s207
      %s227 = sphi 0, %s229
      %s230 = sphi 0, %s227
      %s231 = sphi 0, %s230
      %s247 = sphi 0, %s231
    $region4: #{tpu_custom_call.1} parent=1 // loop_header_branch
      %26 = sbr.rel (%p24) target = $region8
    $region5: #{tpu_custom_call.1} parent=1 // loop_body
      %s28 = ssub.s32 %s23, 1
      %s29 = ssub.s32 %s23, 2
      %s30 = sadd.s32 %s23, 1
      %s31 = ssub.s32 %s23, %s30
      %p32 = scmp.eq.s32.totalorder %s31, 0
      %s34 = sadd.s32 %s33, 1
      %s35 = scalar_select %p32, %s33, %s34
      %p38 = pneg %p32
      %p39 = scmp.eq.s32.totalorder %s23, 1
      %p40 = por %p38, %p39
      %p41 = scmp.ne.s32.totalorder %s33, %s36
      %p42 = scmp.eq.s32.totalorder %s23, 0
      %p43 = por %p41, %p42
      %p44 = scmp.ne.s32.totalorder %s33, %s36
      %p45 = scmp.eq.s32.totalorder %s28, 1
      %p46 = por %p44, %p45
      %p47 = scmp.ne.s32.totalorder %s36, %s37
      %p48 = scmp.eq.s32.totalorder %s28, 0
      %p49 = por %p47, %p48
      %p50 = scmp.ne.s32.totalorder %s36, %s37
      %p51 = scmp.eq.s32.totalorder %s29, 1
      %p52 = por %p50, %p51
      %p54 = scmp.ne.s32.totalorder %s37, %s53
      %p55 = scmp.eq.s32.totalorder %s29, 0
      %p56 = por %p54, %p55
      %s58 = sadd.s32 %s57, 1
      %p61 = scmp.eq.s32.totalorder %s23, 1
      %p62 = scmp.ne.s32.totalorder %s57, %s59
      %p63 = scmp.eq.s32.totalorder %s23, 0
      %p64 = por %p62, %p63
      %p65 = scmp.ne.s32.totalorder %s57, %s59
      %p66 = scmp.eq.s32.totalorder %s28, 1
      %p67 = por %p65, %p66
      %p68 = scmp.ne.s32.totalorder %s59, %s60
      %p69 = scmp.eq.s32.totalorder %s28, 0
      %p70 = por %p68, %p69
      %p71 = scmp.ne.s32.totalorder %s59, %s60
      %p72 = scmp.eq.s32.totalorder %s29, 1
      %p73 = por %p71, %p72
      %p75 = scmp.ne.s32.totalorder %s60, %s74
      %p76 = scmp.eq.s32.totalorder %s29, 0
      %p77 = por %p75, %p76
      %s79 = sadd.s32 %s78, 1
      %p82 = scmp.eq.s32.totalorder %s23, 1
      %p83 = scmp.ne.s32.totalorder %s78, %s80
      %p84 = scmp.eq.s32.totalorder %s23, 0
      %p85 = por %p83, %p84
      %p86 = scmp.ne.s32.totalorder %s78, %s80
      %p87 = scmp.eq.s32.totalorder %s28, 1
      %p88 = por %p86, %p87
      %p89 = scmp.ne.s32.totalorder %s80, %s81
      %p90 = scmp.eq.s32.totalorder %s28, 0
      %p91 = por %p89, %p90
      %p92 = scmp.ne.s32.totalorder %s80, %s81
      %p93 = scmp.eq.s32.totalorder %s29, 1
      %p94 = por %p92, %p93
      %p96 = scmp.ne.s32.totalorder %s81, %s95
      %p97 = scmp.eq.s32.totalorder %s29, 0
      %p98 = por %p96, %p97
      %s100 = sadd.s32 %s99, 1
      %p103 = scmp.eq.s32.totalorder %s23, 1
      %p104 = scmp.ne.s32.totalorder %s99, %s101
      %p105 = scmp.eq.s32.totalorder %s23, 0
      %p106 = por %p104, %p105
      %p107 = scmp.ne.s32.totalorder %s99, %s101
      %p108 = scmp.eq.s32.totalorder %s28, 1
      %p109 = por %p107, %p108
      %p110 = scmp.ne.s32.totalorder %s101, %s102
      %p111 = scmp.eq.s32.totalorder %s28, 0
      %p112 = por %p110, %p111
      %p113 = scmp.ne.s32.totalorder %s101, %s102
      %p114 = scmp.eq.s32.totalorder %s29, 1
      %p115 = por %p113, %p114
      %p117 = scmp.ne.s32.totalorder %s102, %s116
      %p118 = scmp.eq.s32.totalorder %s29, 0
      %p119 = por %p117, %p118
      %s121 = sadd.s32 %s120, 1
      %p124 = scmp.eq.s32.totalorder %s23, 1
      %p125 = scmp.ne.s32.totalorder %s120, %s122
      %p126 = scmp.eq.s32.totalorder %s23, 0
      %p127 = por %p125, %p126
      %p128 = scmp.ne.s32.totalorder %s120, %s122
      %p129 = scmp.eq.s32.totalorder %s28, 1
      %p130 = por %p128, %p129
      %p131 = scmp.ne.s32.totalorder %s122, %s123
      %p132 = scmp.eq.s32.totalorder %s28, 0
      %p133 = por %p131, %p132
      %p134 = scmp.ne.s32.totalorder %s122, %s123
      %p135 = scmp.eq.s32.totalorder %s29, 1
      %p136 = por %p134, %p135
      %p138 = scmp.ne.s32.totalorder %s123, %s137
      %p139 = scmp.eq.s32.totalorder %s29, 0
      %p140 = por %p138, %p139
      %s142 = sadd.s32 %s141, 1
      %p145 = scmp.eq.s32.totalorder %s23, 1
      %p146 = scmp.ne.s32.totalorder %s141, %s143
      %p147 = scmp.eq.s32.totalorder %s23, 0
      %p148 = por %p146, %p147
      %p149 = scmp.ne.s32.totalorder %s141, %s143
      %p150 = scmp.eq.s32.totalorder %s28, 1
      %p151 = por %p149, %p150
      %p152 = scmp.ne.s32.totalorder %s143, %s144
      %p153 = scmp.eq.s32.totalorder %s28, 0
      %p154 = por %p152, %p153
      %p155 = scmp.ne.s32.totalorder %s143, %s144
      %p156 = scmp.eq.s32.totalorder %s29, 1
      %p157 = por %p155, %p156
      %p159 = scmp.ne.s32.totalorder %s144, %s158
      %p160 = scmp.eq.s32.totalorder %s29, 0
      %p161 = por %p159, %p160
      %s163 = sadd.s32 %s162, 1
      %p166 = scmp.eq.s32.totalorder %s23, 1
      %p167 = scmp.ne.s32.totalorder %s162, %s164
      %p168 = scmp.eq.s32.totalorder %s23, 0
      %p169 = por %p167, %p168
      %p170 = scmp.ne.s32.totalorder %s162, %s164
      %p171 = scmp.eq.s32.totalorder %s28, 1
      %p172 = por %p170, %p171
      %p173 = scmp.ne.s32.totalorder %s164, %s165
      %p174 = scmp.eq.s32.totalorder %s28, 0
      %p175 = por %p173, %p174
      %p176 = scmp.ne.s32.totalorder %s164, %s165
      %p177 = scmp.eq.s32.totalorder %s29, 1
      %p178 = por %p176, %p177
      %p180 = scmp.ne.s32.totalorder %s165, %s179
      %p181 = scmp.eq.s32.totalorder %s29, 0
      %p182 = por %p180, %p181
      %s184 = sadd.s32 %s183, 1
      %p187 = scmp.eq.s32.totalorder %s23, 1
      %p188 = scmp.ne.s32.totalorder %s183, %s185
      %p189 = scmp.eq.s32.totalorder %s23, 0
      %p190 = por %p188, %p189
      %p191 = scmp.ne.s32.totalorder %s183, %s185
      %p192 = scmp.eq.s32.totalorder %s28, 1
      %p193 = por %p191, %p192
      %p194 = scmp.ne.s32.totalorder %s185, %s186
      %p195 = scmp.eq.s32.totalorder %s28, 0
      %p196 = por %p194, %p195
      %p197 = scmp.ne.s32.totalorder %s185, %s186
      %p198 = scmp.eq.s32.totalorder %s29, 1
      %p199 = por %p197, %p198
      %p201 = scmp.ne.s32.totalorder %s186, %s200
      %p202 = scmp.eq.s32.totalorder %s29, 0
      %p203 = por %p201, %p202
      %s205 = sadd.s32 %s204, 1
      %p208 = scmp.eq.s32.totalorder %s23, 1
      %p209 = scmp.ne.s32.totalorder %s204, %s206
      %p210 = scmp.eq.s32.totalorder %s23, 0
      %p211 = por %p209, %p210
      %p212 = scmp.ne.s32.totalorder %s204, %s206
      %p213 = scmp.eq.s32.totalorder %s28, 1
      %p214 = por %p212, %p213
      %p215 = scmp.ne.s32.totalorder %s206, %s207
      %p216 = scmp.eq.s32.totalorder %s28, 0
      %p217 = por %p215, %p216
      %p218 = scmp.ne.s32.totalorder %s206, %s207
      %p219 = scmp.eq.s32.totalorder %s29, 1
      %p220 = por %p218, %p219
      %p222 = scmp.ne.s32.totalorder %s207, %s221
      %p223 = scmp.eq.s32.totalorder %s29, 0
      %p224 = por %p222, %p223
      %s225 = ssub.s32 %s23, %s30
      %p226 = scmp.eq.s32.totalorder %s225, 0
      %s228 = sadd.s32 %s227, 1
      %s229 = scalar_select %p226, %s227, %s228
      %p232 = pneg %p226
      %p233 = scmp.eq.s32.totalorder %s23, 1
      %p234 = por %p232, %p233
      %p235 = scmp.ne.s32.totalorder %s227, %s230
      %p236 = scmp.eq.s32.totalorder %s23, 0
      %p237 = por %p235, %p236
      %p238 = scmp.ne.s32.totalorder %s227, %s230
      %p239 = scmp.eq.s32.totalorder %s28, 1
      %p240 = por %p238, %p239
      %p241 = scmp.ne.s32.totalorder %s230, %s231
      %p242 = scmp.eq.s32.totalorder %s28, 0
      %p243 = por %p241, %p242
      %p244 = scmp.ne.s32.totalorder %s230, %s231
      %p245 = scmp.eq.s32.totalorder %s29, 1
      %p246 = por %p244, %p245
      %p248 = scmp.ne.s32.totalorder %s231, %s247
      %p249 = scmp.eq.s32.totalorder %s29, 0
      %p250 = por %p248, %p249
      %p251 = scmp.le.s32.totalorder 1, %s23
      %p252 = scmp.lt.s32.totalorder %s23, 3
      %p253 = pnand %p251, %p252
      %p254 = pneg %p253
      // Predicated region
      $region9: #{tpu_custom_call.1} parent=5 // pred_check
        _
      $region10: #{tpu_custom_call.1} parent=5 // pred_check_branch
        %256 = sbr.rel (%p253) target = $region12
      $region11: #{tpu_custom_call.1} parent=5 // pred_region
        %s257 = ssub.s32 %s23, 1
        // Predicated region
        $region13: #{tpu_custom_call.1} parent=11 // pred_check
          %p258 = pneg %p70
        $region14: #{tpu_custom_call.1} parent=11 // pred_check_branch
          %260 = sbr.rel (%p258) target = $region16
        $region15: #{tpu_custom_call.1} parent=11 // pred_region
          %s262 = ssub.s32 256, 256
          %263 = vsyncadd [#allocation6], %s262
          %s264 = sshll.u32 [#allocation5], 4
          %s265 = int_to_ptr.vmem [resolvable:$true] %s264
          %270 = dma.hbm_to_vmem [thread:$0]  %s1, 256, %s265, [#allocation6], 64, 64, 4
        $region16: #{tpu_custom_call.1} parent=11 // pred_fallthru
          _
        // Predicated region
        $region17: #{tpu_custom_call.1} parent=11 // pred_check
          %p271 = pneg %p91
        $region18: #{tpu_custom_call.1} parent=11 // pred_check_branch
          %273 = sbr.rel (%p271) target = $region20
        $region19: #{tpu_custom_call.1} parent=11 // pred_region
          %s275 = ssub.s32 256, 256
          %276 = vsyncadd [#allocation6], %s275
          %s277 = sshll.u32 [#allocation7], 4
          %s278 = int_to_ptr.vmem [resolvable:$true] %s277
          %283 = dma.hbm_to_vmem [thread:$0]  %s2, 256, %s278, [#allocation6], 64, 64, 4
        $region20: #{tpu_custom_call.1} parent=11 // pred_fallthru
          _
        // Predicated region
        $region21: #{tpu_custom_call.1} parent=11 // pred_check
          %p284 = pneg %p112
        $region22: #{tpu_custom_call.1} parent=11 // pred_check_branch
          %286 = sbr.rel (%p284) target = $region24
        $region23: #{tpu_custom_call.1} parent=11 // pred_region
          %s288 = ssub.s32 256, 256
          %289 = vsyncadd [#allocation9], %s288
          %s290 = sshll.u32 [#allocation8], 4
          %s291 = int_to_ptr.vmem [resolvable:$true] %s290
          %296 = dma.hbm_to_vmem [thread:$0]  %s3, 256, %s291, [#allocation9], 64, 64, 4
        $region24: #{tpu_custom_call.1} parent=11 // pred_fallthru
          _
        // Predicated region
        $region25: #{tpu_custom_call.1} parent=11 // pred_check
          %p297 = pneg %p133
        $region26: #{tpu_custom_call.1} parent=11 // pred_check_branch
          %299 = sbr.rel (%p297) target = $region28
        $region27: #{tpu_custom_call.1} parent=11 // pred_region
          _
        $region28: #{tpu_custom_call.1} parent=11 // pred_fallthru
          _
        // Predicated region
        $region29: #{tpu_custom_call.1} parent=11 // pred_check
          %p300 = pneg %p154
        $region30: #{tpu_custom_call.1} parent=11 // pred_check_branch
          %302 = sbr.rel (%p300) target = $region32
        $region31: #{tpu_custom_call.1} parent=11 // pred_region
          _
        $region32: #{tpu_custom_call.1} parent=11 // pred_fallthru
          _
        // Predicated region
        $region33: #{tpu_custom_call.1} parent=11 // pred_check
          %p303 = pneg %p175
        $region34: #{tpu_custom_call.1} parent=11 // pred_check_branch
          %305 = sbr.rel (%p303) target = $region36
        $region35: #{tpu_custom_call.1} parent=11 // pred_region
          _
        $region36: #{tpu_custom_call.1} parent=11 // pred_fallthru
          _
        // Predicated region
        $region37: #{tpu_custom_call.1} parent=11 // pred_check
          %p306 = pneg %p196
        $region38: #{tpu_custom_call.1} parent=11 // pred_check_branch
          %308 = sbr.rel (%p306) target = $region40
        $region39: #{tpu_custom_call.1} parent=11 // pred_region
          _
        $region40: #{tpu_custom_call.1} parent=11 // pred_fallthru
          _
        // Predicated region
        $region41: #{tpu_custom_call.1} parent=11 // pred_check
          %p309 = pneg %p217
        $region42: #{tpu_custom_call.1} parent=11 // pred_check_branch
          %311 = sbr.rel (%p309) target = $region44
        $region43: #{tpu_custom_call.1} parent=11 // pred_region
          _
        $region44: #{tpu_custom_call.1} parent=11 // pred_fallthru
          _
      $region12: #{tpu_custom_call.1} parent=5 // pred_fallthru
        _
      %p312 = scmp.lt.s32.totalorder %s23, 2
      // Predicated region
      $region45: #{tpu_custom_call.1} parent=5 // pred_check
        %p313 = pneg %p312
      $region46: #{tpu_custom_call.1} parent=5 // pred_check_branch
        %315 = sbr.rel (%p313) target = $region48
      $region47: #{tpu_custom_call.1} parent=5 // pred_region
        // Predicated region
        $region49: #{tpu_custom_call.1} parent=47 // pred_check
          %p316 = pneg %p43
        $region50: #{tpu_custom_call.1} parent=47 // pred_check_branch
          %318 = sbr.rel (%p316) target = $region52
        $region51: #{tpu_custom_call.1} parent=47 // pred_region
          %s319 = sand.u32 %s33, 1
          %s320 = scalar_lea.sflag [#allocation3], %s319
          %s321 = sand.u32 %s33, 1
          %s322 = smul.addr %s321, 8
          %s323 = scalar_lea.vmem [#allocation2], %s322
          %s325 = ssub.s32 128, 128
          %326 = vsyncadd %s320, %s325
          %s327 = smul.addr %s23, 128
          %s328 = scalar_lea.hbm %s0, %s327
          %s330 = sshll.u32 %s323, 4
          %s331 = int_to_ptr.vmem [resolvable:$true] %s330
          %333 = dma.hbm_to_vmem [thread:$0]  %s328, 128, %s331, %s320
        $region52: #{tpu_custom_call.1} parent=47 // pred_fallthru
          _
      $region48: #{tpu_custom_call.1} parent=5 // pred_fallthru
        _
      %p334 = scmp.le.s32.totalorder 1, %s23
      %p335 = scmp.lt.s32.totalorder %s23, 3
      %p336 = pnand %p334, %p335
      %p337 = pneg %p336
      // Predicated region
      $region53: #{tpu_custom_call.1} parent=5 // pred_check
        _
      $region54: #{tpu_custom_call.1} parent=5 // pred_check_branch
        %339 = sbr.rel (%p336) target = $region56
      $region55: #{tpu_custom_call.1} parent=5 // pred_region
        %s340 = ssub.s32 %s23, 1
        %s341 = sand.u32 %s36, 1
        %s342 = scalar_lea.sflag [#allocation3], %s341
        %s343 = sand.u32 %s36, 1
        %s344 = smul.addr %s343, 8
        %s345 = scalar_lea.vmem [#allocation2], %s344
        // Predicated region
        $region57: #{tpu_custom_call.1} parent=55 // pred_check
          %p346 = pneg %p49
        $region58: #{tpu_custom_call.1} parent=55 // pred_check_branch
          %348 = sbr.rel (%p346) target = $region60
        $region59: #{tpu_custom_call.1} parent=55 // pred_region
          %349 = dma.done %s342, 128
        $region60: #{tpu_custom_call.1} parent=55 // pred_fallthru
          _
        // Predicated region
        $region61: #{tpu_custom_call.1} parent=55 // pred_check
          %p350 = pneg %p70
        $region62: #{tpu_custom_call.1} parent=55 // pred_check_branch
          %352 = sbr.rel (%p350) target = $region64
        $region63: #{tpu_custom_call.1} parent=55 // pred_region
          %353 = dma.done [#allocation6], 256
        $region64: #{tpu_custom_call.1} parent=55 // pred_fallthru
          _
        // Predicated region
        $region65: #{tpu_custom_call.1} parent=55 // pred_check
          %p354 = pneg %p91
        $region66: #{tpu_custom_call.1} parent=55 // pred_check_branch
          %356 = sbr.rel (%p354) target = $region68
        $region67: #{tpu_custom_call.1} parent=55 // pred_region
          %357 = dma.done [#allocation6], 256
        $region68: #{tpu_custom_call.1} parent=55 // pred_fallthru
          _
        // Predicated region
        $region69: #{tpu_custom_call.1} parent=55 // pred_check
          %p358 = pneg %p112
        $region70: #{tpu_custom_call.1} parent=55 // pred_check_branch
          %360 = sbr.rel (%p358) target = $region72
        $region71: #{tpu_custom_call.1} parent=55 // pred_region
          %361 = dma.done [#allocation9], 256
        $region72: #{tpu_custom_call.1} parent=55 // pred_fallthru
          _
        %s362 = sand.u32 %s36, 1
        %s363 = scalar_lea.sflag [#allocation3], %s362
        %s364 = sand.u32 %s36, 1
        %s365 = smul.addr %s364, 8
        %s366 = scalar_lea.vmem [#allocation2], %s365
        %p367 = pneg %p49
        %p368 = pneg %p46
        %p369 = pneg %p70
        %p370 = pneg %p67
        %p371 = pneg %p91
        %p372 = pneg %p88
        %p373 = pneg %p112
        %p374 = pneg %p109
        %p375 = pneg %p133
        %p376 = pneg %p130
        %p377 = pneg %p154
        %p378 = pneg %p151
        %p379 = pneg %p175
        %p380 = pneg %p172
        %p381 = pneg %p196
        %p382 = pneg %p193
        %p383 = pneg %p217
        %p384 = pneg %p214
        %p385 = pneg %p243
        %p386 = pneg %p240
        %s387 = sand.u32 %s230, 1
        %s388 = scalar_lea.sflag [#allocation4], %s387
        %s389 = sand.u32 %s230, 1
        %s390 = smul.addr %s389, 8
        %s391 = scalar_lea.vmem [#allocation10], %s390
        %v393 = vld [vmem:[%s345] sm:$0xff]
        %v394 = vpack.c.bf16 %v393, %v393
        %v395 = vld [vmem:[#allocation5] sm:$0xf]
        %v396 = vld [vmem:[#allocation5 + $0x4] sm:$0xf]
        %v397 = vld [vmem:[#allocation5 + $0x8] sm:$0xf]
        %v398 = vld [vmem:[#allocation5 + $0xc] sm:$0xf]
        %v399 = vld [vmem:[%s4] sm:$0x1]
        %v401 = vlaneseq
        %v402 = vshrl.u32 %v401, 7
        %v403 = vsub.s32 0, %v402
        %v404 = vrot.slane %v399, %v403
        %v410 = vunpack.c.l.b16 %v395
        %v411 = vunpack.c.l.b16 %v396
        %v412 = vunpack.c.l.b16 %v397
        %v413 = vunpack.c.l.b16 %v398
        %v414 = vpack.c.b16 %v411, %v410
        %v415 = vpack.c.b16 %v413, %v412
        %vm418 = vcmask 261120
        %v420 = vsel %vm418, %v394, 0
        %422 = vmatprep.subr.bf16.mxu0 0
        %423 = vmatpush1.bf16.msra.mxu0 %v414
        %424 = vmatprep.subr.bf16.mxu0 0
        %425 = vmatpush1.bf16.msra.mxu0 %v415
        %426 = vmatprep.subr.bf16.mxu0 0
        %427 = vmatpush1.bf16.msra.mxu0 0
        %428 = vmatprep.subr.bf16.mxu0 0
        %429 = vmatpush1.bf16.msra.mxu0 0
        %430 = vmatprep.subr.bf16.mxu0 0
        %431 = vmatpush1.bf16.msra.mxu0 0
        %432 = vmatprep.subr.bf16.mxu0 0
        %433 = vmatpush1.bf16.msra.mxu0 0
        %434 = vmatprep.subr.bf16.mxu0 0
        %435 = vmatpush1.bf16.msra.mxu0 0
        %436 = vmatprep.subr.bf16.mxu0 0
        %437 = vmatpush1.bf16.msra.mxu0 0
        %438 = vmatprep.subr.bf16.mxu0 0
        %439 = vmatpush1.bf16.msra.mxu0 0
        %440 = vmatprep.subr.bf16.mxu0 0
        %441 = vmatpush1.bf16.msra.mxu0 0
        %442 = vmatprep.subr.bf16.mxu0 0
        %443 = vmatpush1.bf16.msra.mxu0 0
        %444 = vmatprep.subr.bf16.mxu0 0
        %445 = vmatpush1.bf16.msra.mxu0 0
        %446 = vmatprep.subr.bf16.mxu0 0
        %447 = vmatpush1.bf16.msra.mxu0 0
        %448 = vmatprep.subr.bf16.mxu0 0
        %449 = vmatpush1.bf16.msra.mxu0 0
        %450 = vmatprep.subr.bf16.mxu0 0
        %451 = vmatpush1.bf16.msra.mxu0 0
        %452 = vmatprep.subr.bf16.mxu0 0
        %453 = vmatpush1.bf16.msra.mxu0 0
        %454 = vmatprep.mubr.bf16.mxu0 0
        %455 = vmatmul.mubr.bf16.gmra.mrb[0].mxu0 %v420
        %v456 = vpop.f32.mrb[0].mxu0
        %v457 = vadd.f32 %v404, %v456
        %v458 = vpop.f32.mrb[0].mxu0
        %v459 = vpop.f32.mrb[0].mxu0
        %v460 = vpop.f32.mrb[0].mxu0
        %461 = vdwg.mxu0
        %v462 = vld [vmem:[#allocation7] sm:$0xf]
        %v463 = vld [vmem:[#allocation7 + $0x4] sm:$0xf]
        %v464 = vld [vmem:[#allocation7 + $0x8] sm:$0xf]
        %v465 = vld [vmem:[#allocation7 + $0xc] sm:$0xf]
        %v466 = vld [vmem:[%s5] sm:$0x1]
        %v468 = vlaneseq
        %v469 = vshrl.u32 %v468, 7
        %v470 = vsub.s32 0, %v469
        %v471 = vrot.slane %v466, %v470
        %v477 = vunpack.c.l.b16 %v462
        %v478 = vunpack.c.l.b16 %v463
        %v479 = vunpack.c.l.b16 %v464
        %v480 = vunpack.c.l.b16 %v465
        %v481 = vpack.c.b16 %v478, %v477
        %v482 = vpack.c.b16 %v480, %v479
        %485 = vmatprep.subr.bf16.mxu0 0
        %486 = vmatpush1.bf16.msra.mxu0 %v481
        %487 = vmatprep.subr.bf16.mxu0 0
        %488 = vmatpush1.bf16.msra.mxu0 %v482
        %489 = vmatprep.subr.bf16.mxu0 0
        %490 = vmatpush1.bf16.msra.mxu0 0
        %491 = vmatprep.subr.bf16.mxu0 0
        %492 = vmatpush1.bf16.msra.mxu0 0
        %493 = vmatprep.subr.bf16.mxu0 0
        %494 = vmatpush1.bf16.msra.mxu0 0
        %495 = vmatprep.subr.bf16.mxu0 0
        %496 = vmatpush1.bf16.msra.mxu0 0
        %497 = vmatprep.subr.bf16.mxu0 0
        %498 = vmatpush1.bf16.msra.mxu0 0
        %499 = vmatprep.subr.bf16.mxu0 0
        %500 = vmatpush1.bf16.msra.mxu0 0
        %501 = vmatprep.subr.bf16.mxu0 0
        %502 = vmatpush1.bf16.msra.mxu0 0
        %503 = vmatprep.subr.bf16.mxu0 0
        %504 = vmatpush1.bf16.msra.mxu0 0
        %505 = vmatprep.subr.bf16.mxu0 0
        %506 = vmatpush1.bf16.msra.mxu0 0
        %507 = vmatprep.subr.bf16.mxu0 0
        %508 = vmatpush1.bf16.msra.mxu0 0
        %509 = vmatprep.subr.bf16.mxu0 0
        %510 = vmatpush1.bf16.msra.mxu0 0
        %511 = vmatprep.subr.bf16.mxu0 0
        %512 = vmatpush1.bf16.msra.mxu0 0
        %513 = vmatprep.subr.bf16.mxu0 0
        %514 = vmatpush1.bf16.msra.mxu0 0
        %515 = vmatprep.subr.bf16.mxu0 0
        %516 = vmatpush1.bf16.msra.mxu0 0
        %517 = vmatprep.mubr.bf16.mxu0 0
        %518 = vmatmul.mubr.bf16.gmra.mrb[0].mxu0 %v420
        %v519 = vpop.f32.mrb[0].mxu0
        %v520 = vadd.f32 %v471, %v519
        %v521 = vpop.f32.mrb[0].mxu0
        %v522 = vpop.f32.mrb[0].mxu0
        %v523 = vpop.f32.mrb[0].mxu0
        %524 = vdwg.mxu0
        %v525 = vld [vmem:[#allocation8] sm:$0xf]
        %v526 = vld [vmem:[#allocation8 + $0x4] sm:$0xf]
        %v527 = vld [vmem:[#allocation8 + $0x8] sm:$0xf]
        %v528 = vld [vmem:[#allocation8 + $0xc] sm:$0xf]
        %v529 = vld [vmem:[%s6] sm:$0x1]
        %v531 = vlaneseq
        %v532 = vshrl.u32 %v531, 7
        %v533 = vsub.s32 0, %v532
        %v534 = vrot.slane %v529, %v533
        %v540 = vunpack.c.l.b16 %v525
        %v541 = vunpack.c.l.b16 %v526
        %v542 = vunpack.c.l.b16 %v527
        %v543 = vunpack.c.l.b16 %v528
        %v544 = vpack.c.b16 %v541, %v540
        %v545 = vpack.c.b16 %v543, %v542
        %548 = vmatprep.subr.bf16.mxu0 0
        %549 = vmatpush1.bf16.msra.mxu0 %v544
        %550 = vmatprep.subr.bf16.mxu0 0
        %551 = vmatpush1.bf16.msra.mxu0 %v545
        %552 = vmatprep.subr.bf16.mxu0 0
        %553 = vmatpush1.bf16.msra.mxu0 0
        %554 = vmatprep.subr.bf16.mxu0 0
        %555 = vmatpush1.bf16.msra.mxu0 0
        %556 = vmatprep.subr.bf16.mxu0 0
        %557 = vmatpush1.bf16.msra.mxu0 0
        %558 = vmatprep.subr.bf16.mxu0 0
        %559 = vmatpush1.bf16.msra.mxu0 0
        %560 = vmatprep.subr.bf16.mxu0 0
        %561 = vmatpush1.bf16.msra.mxu0 0
        %562 = vmatprep.subr.bf16.mxu0 0
        %563 = vmatpush1.bf16.msra.mxu0 0
        %564 = vmatprep.subr.bf16.mxu0 0
        %565 = vmatpush1.bf16.msra.mxu0 0
        %566 = vmatprep.subr.bf16.mxu0 0
        %567 = vmatpush1.bf16.msra.mxu0 0
        %568 = vmatprep.subr.bf16.mxu0 0
        %569 = vmatpush1.bf16.msra.mxu0 0
        %570 = vmatprep.subr.bf16.mxu0 0
        %571 = vmatpush1.bf16.msra.mxu0 0
        %572 = vmatprep.subr.bf16.mxu0 0
        %573 = vmatpush1.bf16.msra.mxu0 0
        %574 = vmatprep.subr.bf16.mxu0 0
        %575 = vmatpush1.bf16.msra.mxu0 0
        %576 = vmatprep.subr.bf16.mxu0 0
        %577 = vmatpush1.bf16.msra.mxu0 0
        %578 = vmatprep.subr.bf16.mxu0 0
        %579 = vmatpush1.bf16.msra.mxu0 0
        %580 = vmatprep.mubr.bf16.mxu0 0
        %581 = vmatmul.mubr.bf16.gmra.mrb[0].mxu0 %v420
        %v582 = vpop.f32.mrb[0].mxu0
        %v583 = vadd.f32 %v534, %v582
        %v584 = vpop.f32.mrb[0].mxu0
        %v585 = vpop.f32.mrb[0].mxu0
        %v586 = vpop.f32.mrb[0].mxu0
        %587 = vdwg.mxu0
        %v588 = vpack.c.bf16 %v457, %v457
        %v589 = vpack.c.bf16 %v520, %v520
        %v590 = vpack.c.bf16 %v583, %v583
        %v592 = vsel %vm418, %v588, 0
        %v595 = vsel %vm418, %v589, 0
        %597 = vmatprep.subr.bf16.mxu0 0
        %598 = vmatpush1.bf16.xpose.msra.mxu0 %v595
        %599 = vmatprep.subr.bf16.mxu0 0
        %600 = vmatpush1.bf16.xpose.msra.mxu0 0
        %601 = vmatprep.subr.bf16.mxu0 0
        %602 = vmatpush1.bf16.xpose.msra.mxu0 0
        %603 = vmatprep.subr.bf16.mxu0 0
        %604 = vmatpush1.bf16.xpose.msra.mxu0 0
        %605 = vmatprep.subr.bf16.mxu0 0
        %606 = vmatpush1.bf16.xpose.msra.mxu0 0
        %607 = vmatprep.subr.bf16.mxu0 0
        %608 = vmatpush1.bf16.xpose.msra.mxu0 0
        %609 = vmatprep.subr.bf16.mxu0 0
        %610 = vmatpush1.bf16.xpose.msra.mxu0 0
        %611 = vmatprep.subr.bf16.mxu0 0
        %612 = vmatpush1.bf16.xpose.msra.mxu0 0
        %613 = vmatprep.subr.bf16.mxu0 0
        %614 = vmatpush1.bf16.xpose.msra.mxu0 0
        %615 = vmatprep.subr.bf16.mxu0 0
        %616 = vmatpush1.bf16.xpose.msra.mxu0 0
        %617 = vmatprep.subr.bf16.mxu0 0
        %618 = vmatpush1.bf16.xpose.msra.mxu0 0
        %619 = vmatprep.subr.bf16.mxu0 0
        %620 = vmatpush1.bf16.xpose.msra.mxu0 0
        %621 = vmatprep.subr.bf16.mxu0 0
        %622 = vmatpush1.bf16.xpose.msra.mxu0 0
        %623 = vmatprep.subr.bf16.mxu0 0
        %624 = vmatpush1.bf16.xpose.msra.mxu0 0
        %625 = vmatprep.subr.bf16.mxu0 0
        %626 = vmatpush1.bf16.xpose.msra.mxu0 0
        %627 = vmatprep.subr.bf16.mxu0 0
        %628 = vmatpush1.bf16.xpose.msra.mxu0 0
        %629 = vmatprep.mubr.bf16.mxu0 0
        %630 = vmatmul.mubr.bf16.gmra.mrb[0].mxu0 %v592
        %v631 = vpop.f32.mrb[0].mxu0
        %v632 = vadd.f32 0.0, %v631
        %v633 = vpop.f32.mrb[0].mxu0
        %v634 = vpop.f32.mrb[0].mxu0
        %v635 = vpop.f32.mrb[0].mxu0
        %636 = vdwg.mxu0
        %vm637 = vcmask 64512
        %v638 = vsel %vm637, %v632, -inf
        %639 = vmax.xlane.f32.xlu0 %v638
        %v640 = vpop.xlane.xlu0 %639
        %v641 = vsub.f32 %v632, %v640
        %v642 = vmul.f32 %v641, 1.442695
        %v643 = vpow.pop %v642
        %v644 = vsel %vm637, %v643, 0.0
        %645 = vadd.xlane.f32.xlu0 %v644
        %v646 = vpop.xlane.xlu0 %645
        %v647 = vpack.c.bf16 %v643, %v643
        %v649 = vsel %vm637, %v647, 0
        %vm651 = vcmask 1043456
        %v653 = vsel %vm651, %v590, 0
        %655 = vmatprep.subr.bf16.mxu0 0
        %656 = vmatpush1.bf16.msra.mxu0 %v653
        %657 = vmatprep.subr.bf16.mxu0 0
        %658 = vmatpush1.bf16.msra.mxu0 0
        %659 = vmatprep.subr.bf16.mxu0 0
        %660 = vmatpush1.bf16.msra.mxu0 0
        %661 = vmatprep.subr.bf16.mxu0 0
        %662 = vmatpush1.bf16.msra.mxu0 0
        %663 = vmatprep.subr.bf16.mxu0 0
        %664 = vmatpush1.bf16.msra.mxu0 0
        %665 = vmatprep.subr.bf16.mxu0 0
        %666 = vmatpush1.bf16.msra.mxu0 0
        %667 = vmatprep.subr.bf16.mxu0 0
        %668 = vmatpush1.bf16.msra.mxu0 0
        %669 = vmatprep.subr.bf16.mxu0 0
        %670 = vmatpush1.bf16.msra.mxu0 0
        %671 = vmatprep.subr.bf16.mxu0 0
        %672 = vmatpush1.bf16.msra.mxu0 0
        %673 = vmatprep.subr.bf16.mxu0 0
        %674 = vmatpush1.bf16.msra.mxu0 0
        %675 = vmatprep.subr.bf16.mxu0 0
        %676 = vmatpush1.bf16.msra.mxu0 0
        %677 = vmatprep.subr.bf16.mxu0 0
        %678 = vmatpush1.bf16.msra.mxu0 0
        %679 = vmatprep.subr.bf16.mxu0 0
        %680 = vmatpush1.bf16.msra.mxu0 0
        %681 = vmatprep.subr.bf16.mxu0 0
        %682 = vmatpush1.bf16.msra.mxu0 0
        %683 = vmatprep.subr.bf16.mxu0 0
        %684 = vmatpush1.bf16.msra.mxu0 0
        %685 = vmatprep.subr.bf16.mxu0 0
        %686 = vmatpush1.bf16.msra.mxu0 0
        %687 = vmatprep.mubr.bf16.mxu0 0
        %688 = vmatmul.mubr.bf16.gmra.mrb[0].mxu0 %v649
        %v689 = vpop.f32.mrb[0].mxu0
        %v690 = vadd.f32 0.0, %v689
        %v691 = vpop.f32.mrb[0].mxu0
        %v692 = vpop.f32.mrb[0].mxu0
        %v693 = vpop.f32.mrb[0].mxu0
        %694 = vdwg.mxu0
        %v695 = vrcp.pop %v646
        %v696 = vmul.f32 %v690, %v695
        %v697 = vpack.c.bf16 %v696, %v696
        %v698 = vld [vmem:[%s7] sm:$0xf]
        %v699 = vld [vmem:[%s7 + $0x4] sm:$0xf]
        %v700 = vld [vmem:[%s7 + $0x8] sm:$0xf]
        %v701 = vld [vmem:[%s7 + $0xc] sm:$0xf]
        %v702 = vld [vmem:[%s8] sm:$0x1]
        %v704 = vlaneseq
        %v705 = vshrl.u32 %v704, 7
        %v706 = vsub.s32 0, %v705
        %v707 = vrot.slane %v702, %v706
        %v713 = vunpack.c.l.b16 %v698
        %v714 = vunpack.c.l.b16 %v699
        %v715 = vunpack.c.l.b16 %v700
        %v716 = vunpack.c.l.b16 %v701
        %v717 = vpack.c.b16 %v714, %v713
        %v718 = vpack.c.b16 %v716, %v715
        %v722 = vsel %vm418, %v697, 0
        %724 = vmatprep.subr.bf16.mxu0 0
        %725 = vmatpush1.bf16.msra.mxu0 %v717
        %726 = vmatprep.subr.bf16.mxu0 0
        %727 = vmatpush1.bf16.msra.mxu0 %v718
        %728 = vmatprep.subr.bf16.mxu0 0
        %729 = vmatpush1.bf16.msra.mxu0 0
        %730 = vmatprep.subr.bf16.mxu0 0
        %731 = vmatpush1.bf16.msra.mxu0 0
        %732 = vmatprep.subr.bf16.mxu0 0
        %733 = vmatpush1.bf16.msra.mxu0 0
        %734 = vmatprep.subr.bf16.mxu0 0
        %735 = vmatpush1.bf16.msra.mxu0 0
        %736 = vmatprep.subr.bf16.mxu0 0
        %737 = vmatpush1.bf16.msra.mxu0 0
        %738 = vmatprep.subr.bf16.mxu0 0
        %739 = vmatpush1.bf16.msra.mxu0 0
        %740 = vmatprep.subr.bf16.mxu0 0
        %741 = vmatpush1.bf16.msra.mxu0 0
        %742 = vmatprep.subr.bf16.mxu0 0
        %743 = vmatpush1.bf16.msra.mxu0 0
        %744 = vmatprep.subr.bf16.mxu0 0
        %745 = vmatpush1.bf16.msra.mxu0 0
        %746 = vmatprep.subr.bf16.mxu0 0
        %747 = vmatpush1.bf16.msra.mxu0 0
        %748 = vmatprep.subr.bf16.mxu0 0
        %749 = vmatpush1.bf16.msra.mxu0 0
        %750 = vmatprep.subr.bf16.mxu0 0
        %751 = vmatpush1.bf16.msra.mxu0 0
        %752 = vmatprep.subr.bf16.mxu0 0
        %753 = vmatpush1.bf16.msra.mxu0 0
        %754 = vmatprep.subr.bf16.mxu0 0
        %755 = vmatpush1.bf16.msra.mxu0 0
        %756 = vmatprep.mubr.bf16.mxu0 0
        %757 = vmatmul.mubr.bf16.gmra.mrb[0].mxu0 %v722
        %v758 = vpop.f32.mrb[0].mxu0
        %v759 = vadd.f32 %v707, %v758
        %v760 = vpop.f32.mrb[0].mxu0
        %v761 = vpop.f32.mrb[0].mxu0
        %v762 = vpop.f32.mrb[0].mxu0
        %763 = vdwg.mxu0
        %v764 = vadd.f32 %v759, %v393
        %765 = vst.msk [vmem:[%s391] sm:$0xff] %vm418, %v764
        %s766 = sand.u32 %s230, 1
        %s767 = scalar_lea.sflag [#allocation4], %s766
        %s768 = sand.u32 %s230, 1
        %s769 = smul.addr %s768, 8
        %s770 = scalar_lea.vmem [#allocation10], %s769
        // Predicated region
        $region73: #{tpu_custom_call.1} parent=55 // pred_check
          %p771 = pneg %p240
        $region74: #{tpu_custom_call.1} parent=55 // pred_check_branch
          %773 = sbr.rel (%p771) target = $region76
        $region75: #{tpu_custom_call.1} parent=55 // pred_region
          %s775 = ssub.s32 128, 128
          %776 = vsyncadd %s767, %s775
          %s777 = smul.addr %s28, 128
          %s778 = scalar_lea.hbm %s9, %s777
          %s780 = sshll.u32 %s770, 4
          %s781 = int_to_ptr.vmem [resolvable:$true] %s780
          %783 = dma.vmem_to_hbm [thread:$0]  %s781, 128, %s778, %s767
        $region76: #{tpu_custom_call.1} parent=55 // pred_fallthru
          _
      $region56: #{tpu_custom_call.1} parent=5 // pred_fallthru
        _
      %p784 = scmp.le.s32.totalorder 2, %s23
      // Predicated region
      $region77: #{tpu_custom_call.1} parent=5 // pred_check
        %p785 = pneg %p784
      $region78: #{tpu_custom_call.1} parent=5 // pred_check_branch
        %787 = sbr.rel (%p785) target = $region80
      $region79: #{tpu_custom_call.1} parent=5 // pred_region
        %s788 = ssub.s32 %s23, 2
        // Predicated region
        $region81: #{tpu_custom_call.1} parent=79 // pred_check
          %p789 = pneg %p246
        $region82: #{tpu_custom_call.1} parent=79 // pred_check_branch
          %791 = sbr.rel (%p789) target = $region84
        $region83: #{tpu_custom_call.1} parent=79 // pred_region
          %s792 = sand.u32 %s231, 1
          %s793 = scalar_lea.sflag [#allocation4], %s792
          %s794 = sand.u32 %s231, 1
          %s795 = smul.addr %s794, 8
          %s796 = scalar_lea.vmem [#allocation10], %s795
          %797 = dma.done %s793, 128
        $region84: #{tpu_custom_call.1} parent=79 // pred_fallthru
          _
      $region80: #{tpu_custom_call.1} parent=5 // pred_fallthru
        _
    $region6: #{tpu_custom_call.1} parent=1 // loop_footer
      %s27 = sadd.s32 1, %s23
    $region7: #{tpu_custom_call.1} parent=1 // loop_footer_branch
      %22 = sbr.rel target = $region3
    $region8: #{tpu_custom_call.1} parent=1 // loop_exit
      _
    %798 = vsyncpa [#allocation3], 1
    %s799 = scalar_lea.sflag [#allocation3], 1
    %800 = vsyncpa %s799, 1
    %801 = vsyncpa [#allocation6], 1
    %802 = vsyncpa [#allocation9], 1
    %803 = vsyncpa [#allocation4], 1
    %s804 = scalar_lea.sflag [#allocation4], 1
    %805 = vsyncpa %s804, 1

// kernel: tpu_custom_call.1
$region0: #{tpu_custom_call.1}
  #allocation0 [shape = 'u32[]', space=smem, size = 0x4, offset = 0x4, fixed_abs, tag = 'smem constant byte address 0x4 - core index']
  #allocation1 [shape = 'u32[144,128]{1,0:T(1,128)}', space=vmem, size = 0x12000, scoped, tag = 'internal scratch']
  %s0 = inlined_call_operand.hbm [shape: f32[2,8,32], index: 0, kind: input, shape index: {}]
  %s1 = inlined_call_operand.hbm [shape: bf16[32,32], index: 1, kind: input, shape index: {}]
  %s2 = inlined_call_operand.hbm [shape: bf16[32,32], index: 2, kind: input, shape index: {}]
  %s3 = inlined_call_operand.hbm [shape: bf16[32,32], index: 3, kind: input, shape index: {}]
  %s4 = inlined_call_operand.vmem [shape: f32[1,32], index: 4, kind: input, shape index: {}]
  %s5 = inlined_call_operand.vmem [shape: f32[1,32], index: 5, kind: input, shape index: {}]
  %s6 = inlined_call_operand.vmem [shape: f32[1,32], index: 6, kind: input, shape index: {}]
  %s7 = inlined_call_operand.vmem [shape: bf16[32,32], index: 7, kind: input, shape index: {}]
  %s8 = inlined_call_operand.vmem [shape: f32[1,32], index: 8, kind: input, shape index: {}]
  %s9 = inlined_call_operand.hbm [shape: f32[2,8,32], index: 9, kind: output, shape index: {}]
  %s10 = sld [smem:[#allocation0]]
  $region85: #{tpu_custom_call.1} parent=0
    _
  %s12 = ssub.s32 1, %s10
  %s13 = scalar_select 0, %s12, %s10
  $region1: #{tpu_custom_call.1} parent=0
    #allocation2 [shape = 'u8[8192]{0}', space=vmem, size = 0x2000, scoped, tag = 'input window, operand 0']
    #allocation3 [shape = 's32[2]{0}', space=sflag, size = 0x8, scoped, tag = 'scoped memory for tpu_custom_call.1']
    #allocation4 [shape = 's32[2]{0}', space=sflag, size = 0x8, scoped, tag = 'scoped memory for tpu_custom_call.1']
    #allocation5 [shape = 'u8[8192]{0}', space=vmem, size = 0x2000, scoped, tag = 'input window, operand 1, single buffered']
    #allocation6 [shape = 's32[1]{0}', space=sflag, size = 0x4, scoped, tag = 'scoped memory for tpu_custom_call.1']
    #allocation7 [shape = 'u8[8192]{0}', space=vmem, size = 0x2000, scoped, tag = 'input window, operand 2, single buffered']
    #allocation8 [shape = 'u8[8192]{0}', space=vmem, size = 0x2000, scoped, tag = 'input window, operand 3, single buffered']
    #allocation9 [shape = 's32[1]{0}', space=sflag, size = 0x4, scoped, tag = 'scoped memory for tpu_custom_call.1']
    #allocation10 [shape = 'u8[8192]{0}', space=vmem, size = 0x2000, scoped, tag = 'output window, operand 0']
    %14 = vsyncpa [#allocation3], 0
    %s15 = scalar_lea.sflag [#allocation3], 1
    %16 = vsyncpa %s15, 0
    %17 = vsyncpa [#allocation6], 0
    %18 = vsyncpa [#allocation9], 0
    %19 = vsyncpa [#allocation4], 0
    %s20 = scalar_lea.sflag [#allocation4], 1
    %21 = vsyncpa %s20, 0
    loop: start=0, step=1, limit=4
    $region2: #{tpu_custom_call.1} parent=1 // loop_pre_header
      _
    $region3: #{tpu_custom_call.1} parent=1 // loop_header
      %s23 = sphi 0, %s27
      %p24 = scmp.ge.s32.totalorder %s23, 4
      %s33 = sphi 0, %s35
      %s36 = sphi 0, %s33
      %s37 = sphi 0, %s36
      %s53 = sphi 0, %s37
      %s57 = sphi 0, %s57
      %s59 = sphi 0, %s57
      %s60 = sphi 0, %s59
      %s74 = sphi 0, %s60
      %s78 = sphi 0, %s78
      %s80 = sphi 0, %s78
      %s81 = sphi 0, %s80
      %s95 = sphi 0, %s81
      %s99 = sphi 0, %s99
      %s101 = sphi 0, %s99
      %s102 = sphi 0, %s101
      %s116 = sphi 0, %s102
      %s120 = sphi 0, %s120
      %s122 = sphi 0, %s120
      %s123 = sphi 0, %s122
      %s137 = sphi 0, %s123
      %s141 = sphi 0, %s141
      %s143 = sphi 0, %s141
      %s144 = sphi 0, %s143
      %s158 = sphi 0, %s144
      %s162 = sphi 0, %s162
      %s164 = sphi 0, %s162
      %s165 = sphi 0, %s164
      %s179 = sphi 0, %s165
      %s183 = sphi 0, %s183
      %s185 = sphi 0, %s183
      %s186 = sphi 0, %s185
      %s200 = sphi 0, %s186
      %s204 = sphi 0, %s204
      %s206 = sphi 0, %s204
      %s207 = sphi 0, %s206
      %s221 = sphi 0, %s207
      %s227 = sphi 0, %s229
      %s230 = sphi 0, %s227
      %s231 = sphi 0, %s230
      %s247 = sphi 0, %s231
    $region4: #{tpu_custom_call.1} parent=1 // loop_header_branch
      %26 = sbr.rel (%p24) target = $region8
    $region5: #{tpu_custom_call.1} parent=1 // loop_body
      %s28 = ssub.s32 %s23, 1
      %s29 = ssub.s32 %s23, 2
      %s30 = sadd.s32 %s23, 1
      %s31 = ssub.s32 %s23, %s30
      %p32 = scmp.eq.s32.totalorder %s31, 0
      %s34 = sadd.s32 %s33, 1
      %s35 = scalar_select %p32, %s33, %s34
      %p38 = pneg %p32
      %p39 = scmp.eq.s32.totalorder %s23, 1
      %p40 = por %p38, %p39
      %p41 = scmp.ne.s32.totalorder %s33, %s36
      %p42 = scmp.eq.s32.totalorder %s23, 0
      %p43 = por %p41, %p42
      %p44 = scmp.ne.s32.totalorder %s33, %s36
      %p45 = scmp.eq.s32.totalorder %s28, 1
      %p46 = por %p44, %p45
      %p47 = scmp.ne.s32.totalorder %s36, %s37
      %p48 = scmp.eq.s32.totalorder %s28, 0
      %p49 = por %p47, %p48
      %p50 = scmp.ne.s32.totalorder %s36, %s37
      %p51 = scmp.eq.s32.totalorder %s29, 1
      %p52 = por %p50, %p51
      %p54 = scmp.ne.s32.totalorder %s37, %s53
      %p55 = scmp.eq.s32.totalorder %s29, 0
      %p56 = por %p54, %p55
      %s58 = sadd.s32 %s57, 1
      %p61 = scmp.eq.s32.totalorder %s23, 1
      %p62 = scmp.ne.s32.totalorder %s57, %s59
      %p63 = scmp.eq.s32.totalorder %s23, 0
      %p64 = por %p62, %p63
      %p65 = scmp.ne.s32.totalorder %s57, %s59
      %p66 = scmp.eq.s32.totalorder %s28, 1
      %p67 = por %p65, %p66
      %p68 = scmp.ne.s32.totalorder %s59, %s60
      %p69 = scmp.eq.s32.totalorder %s28, 0
      %p70 = por %p68, %p69
      %p71 = scmp.ne.s32.totalorder %s59, %s60
      %p72 = scmp.eq.s32.totalorder %s29, 1
      %p73 = por %p71, %p72
      %p75 = scmp.ne.s32.totalorder %s60, %s74
      %p76 = scmp.eq.s32.totalorder %s29, 0
      %p77 = por %p75, %p76
      %s79 = sadd.s32 %s78, 1
      %p82 = scmp.eq.s32.totalorder %s23, 1
      %p83 = scmp.ne.s32.totalorder %s78, %s80
      %p84 = scmp.eq.s32.totalorder %s23, 0
      %p85 = por %p83, %p84
      %p86 = scmp.ne.s32.totalorder %s78, %s80
      %p87 = scmp.eq.s32.totalorder %s28, 1
      %p88 = por %p86, %p87
      %p89 = scmp.ne.s32.totalorder %s80, %s81
      %p90 = scmp.eq.s32.totalorder %s28, 0
      %p91 = por %p89, %p90
      %p92 = scmp.ne.s32.totalorder %s80, %s81
      %p93 = scmp.eq.s32.totalorder %s29, 1
      %p94 = por %p92, %p93
      %p96 = scmp.ne.s32.totalorder %s81, %s95
      %p97 = scmp.eq.s32.totalorder %s29, 0
      %p98 = por %p96, %p97
      %s100 = sadd.s32 %s99, 1
      %p103 = scmp.eq.s32.totalorder %s23, 1
      %p104 = scmp.ne.s32.totalorder %s99, %s101
      %p105 = scmp.eq.s32.totalorder %s23, 0
      %p106 = por %p104, %p105
      %p107 = scmp.ne.s32.totalorder %s99, %s101
      %p108 = scmp.eq.s32.totalorder %s28, 1
      %p109 = por %p107, %p108
      %p110 = scmp.ne.s32.totalorder %s101, %s102
      %p111 = scmp.eq.s32.totalorder %s28, 0
      %p112 = por %p110, %p111
      %p113 = scmp.ne.s32.totalorder %s101, %s102
      %p114 = scmp.eq.s32.totalorder %s29, 1
      %p115 = por %p113, %p114
      %p117 = scmp.ne.s32.totalorder %s102, %s116
      %p118 = scmp.eq.s32.totalorder %s29, 0
      %p119 = por %p117, %p118
      %s121 = sadd.s32 %s120, 1
      %p124 = scmp.eq.s32.totalorder %s23, 1
      %p125 = scmp.ne.s32.totalorder %s120, %s122
      %p126 = scmp.eq.s32.totalorder %s23, 0
      %p127 = por %p125, %p126
      %p128 = scmp.ne.s32.totalorder %s120, %s122
      %p129 = scmp.eq.s32.totalorder %s28, 1
      %p130 = por %p128, %p129
      %p131 = scmp.ne.s32.totalorder %s122, %s123
      %p132 = scmp.eq.s32.totalorder %s28, 0
      %p133 = por %p131, %p132
      %p134 = scmp.ne.s32.totalorder %s122, %s123
      %p135 = scmp.eq.s32.totalorder %s29, 1
      %p136 = por %p134, %p135
      %p138 = scmp.ne.s32.totalorder %s123, %s137
      %p139 = scmp.eq.s32.totalorder %s29, 0
      %p140 = por %p138, %p139
      %s142 = sadd.s32 %s141, 1
      %p145 = scmp.eq.s32.totalorder %s23, 1
      %p146 = scmp.ne.s32.totalorder %s141, %s143
      %p147 = scmp.eq.s32.totalorder %s23, 0
      %p148 = por %p146, %p147
      %p149 = scmp.ne.s32.totalorder %s141, %s143
      %p150 = scmp.eq.s32.totalorder %s28, 1
      %p151 = por %p149, %p150
      %p152 = scmp.ne.s32.totalorder %s143, %s144
      %p153 = scmp.eq.s32.totalorder %s28, 0
      %p154 = por %p152, %p153
      %p155 = scmp.ne.s32.totalorder %s143, %s144
      %p156 = scmp.eq.s32.totalorder %s29, 1
      %p157 = por %p155, %p156
      %p159 = scmp.ne.s32.totalorder %s144, %s158
      %p160 = scmp.eq.s32.totalorder %s29, 0
      %p161 = por %p159, %p160
      %s163 = sadd.s32 %s162, 1
      %p166 = scmp.eq.s32.totalorder %s23, 1
      %p167 = scmp.ne.s32.totalorder %s162, %s164
      %p168 = scmp.eq.s32.totalorder %s23, 0
      %p169 = por %p167, %p168
      %p170 = scmp.ne.s32.totalorder %s162, %s164
      %p171 = scmp.eq.s32.totalorder %s28, 1
      %p172 = por %p170, %p171
      %p173 = scmp.ne.s32.totalorder %s164, %s165
      %p174 = scmp.eq.s32.totalorder %s28, 0
      %p175 = por %p173, %p174
      %p176 = scmp.ne.s32.totalorder %s164, %s165
      %p177 = scmp.eq.s32.totalorder %s29, 1
      %p178 = por %p176, %p177
      %p180 = scmp.ne.s32.totalorder %s165, %s179
      %p181 = scmp.eq.s32.totalorder %s29, 0
      %p182 = por %p180, %p181
      %s184 = sadd.s32 %s183, 1
      %p187 = scmp.eq.s32.totalorder %s23, 1
      %p188 = scmp.ne.s32.totalorder %s183, %s185
      %p189 = scmp.eq.s32.totalorder %s23, 0
      %p190 = por %p188, %p189
      %p191 = scmp.ne.s32.totalorder %s183, %s185
      %p192 = scmp.eq.s32.totalorder %s28, 1
      %p193 = por %p191, %p192
      %p194 = scmp.ne.s32.totalorder %s185, %s186
      %p195 = scmp.eq.s32.totalorder %s28, 0
      %p196 = por %p194, %p195
      %p197 = scmp.ne.s32.totalorder %s185, %s186
      %p198 = scmp.eq.s32.totalorder %s29, 1
      %p199 = por %p197, %p198
      %p201 = scmp.ne.s32.totalorder %s186, %s200
      %p202 = scmp.eq.s32.totalorder %s29, 0
      %p203 = por %p201, %p202
      %s205 = sadd.s32 %s204, 1
      %p208 = scmp.eq.s32.totalorder %s23, 1
      %p209 = scmp.ne.s32.totalorder %s204, %s206
      %p210 = scmp.eq.s32.totalorder %s23, 0
      %p211 = por %p209, %p210
      %p212 = scmp.ne.s32.totalorder %s204, %s206
      %p213 = scmp.eq.s32.totalorder %s28, 1
      %p214 = por %p212, %p213
      %p215 = scmp.ne.s32.totalorder %s206, %s207
      %p216 = scmp.eq.s32.totalorder %s28, 0
      %p217 = por %p215, %p216
      %p218 = scmp.ne.s32.totalorder %s206, %s207
      %p219 = scmp.eq.s32.totalorder %s29, 1
      %p220 = por %p218, %p219
      %p222 = scmp.ne.s32.totalorder %s207, %s221
      %p223 = scmp.eq.s32.totalorder %s29, 0
      %p224 = por %p222, %p223
      %s225 = ssub.s32 %s23, %s30
      %p226 = scmp.eq.s32.totalorder %s225, 0
      %s228 = sadd.s32 %s227, 1
      %s229 = scalar_select %p226, %s227, %s228
      %p232 = pneg %p226
      %p233 = scmp.eq.s32.totalorder %s23, 1
      %p234 = por %p232, %p233
      %p235 = scmp.ne.s32.totalorder %s227, %s230
      %p236 = scmp.eq.s32.totalorder %s23, 0
      %p237 = por %p235, %p236
      %p238 = scmp.ne.s32.totalorder %s227, %s230
      %p239 = scmp.eq.s32.totalorder %s28, 1
      %p240 = por %p238, %p239
      %p241 = scmp.ne.s32.totalorder %s230, %s231
      %p242 = scmp.eq.s32.totalorder %s28, 0
      %p243 = por %p241, %p242
      %p244 = scmp.ne.s32.totalorder %s230, %s231
      %p245 = scmp.eq.s32.totalorder %s29, 1
      %p246 = por %p244, %p245
      %p248 = scmp.ne.s32.totalorder %s231, %s247
      %p249 = scmp.eq.s32.totalorder %s29, 0
      %p250 = por %p248, %p249
      %p251 = scmp.le.s32.totalorder 1, %s23
      %p252 = scmp.lt.s32.totalorder %s23, 3
      %p253 = pnand %p251, %p252
      %p254 = pneg %p253
      // Predicated region
      $region9: #{tpu_custom_call.1} parent=5 // pred_check
        _
      $region10: #{tpu_custom_call.1} parent=5 // pred_check_branch
        %256 = sbr.rel (%p253) target = $region12
      $region11: #{tpu_custom_call.1} parent=5 // pred_region
        %s257 = ssub.s32 %s23, 1
        // Predicated region
        $region13: #{tpu_custom_call.1} parent=11 // pred_check
          %p258 = pneg %p70
        $region14: #{tpu_custom_call.1} parent=11 // pred_check_branch
          %260 = sbr.rel (%p258) target = $region16
        $region15: #{tpu_custom_call.1} parent=11 // pred_region
          %s262 = ssub.s32 256, 256
          %263 = vsyncadd [#allocation6], %s262
          %s264 = sshll.u32 [#allocation5], 4
          %s265 = int_to_ptr.vmem [resolvable:$true] %s264
          %270 = dma.hbm_to_vmem [thread:$0]  %s1, 256, %s265, [#allocation6], 64, 64, 4
        $region16: #{tpu_custom_call.1} parent=11 // pred_fallthru
          _
        // Predicated region
        $region17: #{tpu_custom_call.1} parent=11 // pred_check
          %p271 = pneg %p91
        $region18: #{tpu_custom_call.1} parent=11 // pred_check_branch
          %273 = sbr.rel (%p271) target = $region20
        $region19: #{tpu_custom_call.1} parent=11 // pred_region
          %s275 = ssub.s32 256, 256
          %276 = vsyncadd [#allocation6], %s275
          %s277 = sshll.u32 [#allocation7], 4
          %s278 = int_to_ptr.vmem [resolvable:$true] %s277
          %283 = dma.hbm_to_vmem [thread:$0]  %s2, 256, %s278, [#allocation6], 64, 64, 4
        $region20: #{tpu_custom_call.1} parent=11 // pred_fallthru
          _
        // Predicated region
        $region21: #{tpu_custom_call.1} parent=11 // pred_check
          %p284 = pneg %p112
        $region22: #{tpu_custom_call.1} parent=11 // pred_check_branch
          %286 = sbr.rel (%p284) target = $region24
        $region23: #{tpu_custom_call.1} parent=11 // pred_region
          %s288 = ssub.s32 256, 256
          %289 = vsyncadd [#allocation9], %s288
          %s290 = sshll.u32 [#allocation8], 4
          %s291 = int_to_ptr.vmem [resolvable:$true] %s290
          %296 = dma.hbm_to_vmem [thread:$0]  %s3, 256, %s291, [#allocation9], 64, 64, 4
        $region24: #{tpu_custom_call.1} parent=11 // pred_fallthru
          _
        // Predicated region
        $region25: #{tpu_custom_call.1} parent=11 // pred_check
          %p297 = pneg %p133
        $region26: #{tpu_custom_call.1} parent=11 // pred_check_branch
          %299 = sbr.rel (%p297) target = $region28
        $region27: #{tpu_custom_call.1} parent=11 // pred_region
          _
        $region28: #{tpu_custom_call.1} parent=11 // pred_fallthru
          _
        // Predicated region
        $region29: #{tpu_custom_call.1} parent=11 // pred_check
          %p300 = pneg %p154
        $region30: #{tpu_custom_call.1} parent=11 // pred_check_branch
          %302 = sbr.rel (%p300) target = $region32
        $region31: #{tpu_custom_call.1} parent=11 // pred_region
          _
        $region32: #{tpu_custom_call.1} parent=11 // pred_fallthru
          _
        // Predicated region
        $region33: #{tpu_custom_call.1} parent=11 // pred_check
          %p303 = pneg %p175
        $region34: #{tpu_custom_call.1} parent=11 // pred_check_branch
          %305 = sbr.rel (%p303) target = $region36
        $region35: #{tpu_custom_call.1} parent=11 // pred_region
          _
        $region36: #{tpu_custom_call.1} parent=11 // pred_fallthru
          _
        // Predicated region
        $region37: #{tpu_custom_call.1} parent=11 // pred_check
          %p306 = pneg %p196
        $region38: #{tpu_custom_call.1} parent=11 // pred_check_branch
          %308 = sbr.rel (%p306) target = $region40
        $region39: #{tpu_custom_call.1} parent=11 // pred_region
          _
        $region40: #{tpu_custom_call.1} parent=11 // pred_fallthru
          _
        // Predicated region
        $region41: #{tpu_custom_call.1} parent=11 // pred_check
          %p309 = pneg %p217
        $region42: #{tpu_custom_call.1} parent=11 // pred_check_branch
          %311 = sbr.rel (%p309) target = $region44
        $region43: #{tpu_custom_call.1} parent=11 // pred_region
          _
        $region44: #{tpu_custom_call.1} parent=11 // pred_fallthru
          _
      $region12: #{tpu_custom_call.1} parent=5 // pred_fallthru
        _
      %p312 = scmp.lt.s32.totalorder %s23, 2
      // Predicated region
      $region45: #{tpu_custom_call.1} parent=5 // pred_check
        %p313 = pneg %p312
      $region46: #{tpu_custom_call.1} parent=5 // pred_check_branch
        %315 = sbr.rel (%p313) target = $region48
      $region47: #{tpu_custom_call.1} parent=5 // pred_region
        // Predicated region
        $region49: #{tpu_custom_call.1} parent=47 // pred_check
          %p316 = pneg %p43
        $region50: #{tpu_custom_call.1} parent=47 // pred_check_branch
          %318 = sbr.rel (%p316) target = $region52
        $region51: #{tpu_custom_call.1} parent=47 // pred_region
          %s319 = sand.u32 %s33, 1
          %s320 = scalar_lea.sflag [#allocation3], %s319
          %s321 = sand.u32 %s33, 1
          %s322 = smul.addr %s321, 8
          %s323 = scalar_lea.vmem [#allocation2], %s322
          %s325 = ssub.s32 128, 128
          %326 = vsyncadd %s320, %s325
          %s327 = smul.addr %s23, 128
          %s328 = scalar_lea.hbm %s0, %s327
          %s330 = sshll.u32 %s323, 4
          %s331 = int_to_ptr.vmem [resolvable:$true] %s330
          %333 = dma.hbm_to_vmem [thread:$0]  %s328, 128, %s331, %s320
        $region52: #{tpu_custom_call.1} parent=47 // pred_fallthru
          _
      $region48: #{tpu_custom_call.1} parent=5 // pred_fallthru
        _
      %p334 = scmp.le.s32.totalorder 1, %s23
      %p335 = scmp.lt.s32.totalorder %s23, 3
      %p336 = pnand %p334, %p335
      %p337 = pneg %p336
      // Predicated region
      $region53: #{tpu_custom_call.1} parent=5 // pred_check
        _
      $region54: #{tpu_custom_call.1} parent=5 // pred_check_branch
        %339 = sbr.rel (%p336) target = $region56
      $region55: #{tpu_custom_call.1} parent=5 // pred_region
        %s340 = ssub.s32 %s23, 1
        %s341 = sand.u32 %s36, 1
        %s342 = scalar_lea.sflag [#allocation3], %s341
        %s343 = sand.u32 %s36, 1
        %s344 = smul.addr %s343, 8
        %s345 = scalar_lea.vmem [#allocation2], %s344
        // Predicated region
        $region57: #{tpu_custom_call.1} parent=55 // pred_check
          %p346 = pneg %p49
        $region58: #{tpu_custom_call.1} parent=55 // pred_check_branch
          %348 = sbr.rel (%p346) target = $region60
        $region59: #{tpu_custom_call.1} parent=55 // pred_region
          %349 = dma.done %s342, 128
        $region60: #{tpu_custom_call.1} parent=55 // pred_fallthru
          _
        // Predicated region
        $region61: #{tpu_custom_call.1} parent=55 // pred_check
          %p350 = pneg %p70
        $region62: #{tpu_custom_call.1} parent=55 // pred_check_branch
          %352 = sbr.rel (%p350) target = $region64
        $region63: #{tpu_custom_call.1} parent=55 // pred_region
          %353 = dma.done [#allocation6], 256
        $region64: #{tpu_custom_call.1} parent=55 // pred_fallthru
          _
        // Predicated region
        $region65: #{tpu_custom_call.1} parent=55 // pred_check
          %p354 = pneg %p91
        $region66: #{tpu_custom_call.1} parent=55 // pred_check_branch
          %356 = sbr.rel (%p354) target = $region68
        $region67: #{tpu_custom_call.1} parent=55 // pred_region
          %357 = dma.done [#allocation6], 256
        $region68: #{tpu_custom_call.1} parent=55 // pred_fallthru
          _
        // Predicated region
        $region69: #{tpu_custom_call.1} parent=55 // pred_check
          %p358 = pneg %p112
        $region70: #{tpu_custom_call.1} parent=55 // pred_check_branch
          %360 = sbr.rel (%p358) target = $region72
        $region71: #{tpu_custom_call.1} parent=55 // pred_region
          %361 = dma.done [#allocation9], 256
        $region72: #{tpu_custom_call.1} parent=55 // pred_fallthru
          _
        %s362 = sand.u32 %s36, 1
        %s363 = scalar_lea.sflag [#allocation3], %s362
        %s364 = sand.u32 %s36, 1
        %s365 = smul.addr %s364, 8
        %s366 = scalar_lea.vmem [#allocation2], %s365
        %p367 = pneg %p49
        %p368 = pneg %p46
        %p369 = pneg %p70
        %p370 = pneg %p67
        %p371 = pneg %p91
        %p372 = pneg %p88
        %p373 = pneg %p112
        %p374 = pneg %p109
        %p375 = pneg %p133
        %p376 = pneg %p130
        %p377 = pneg %p154
        %p378 = pneg %p151
        %p379 = pneg %p175
        %p380 = pneg %p172
        %p381 = pneg %p196
        %p382 = pneg %p193
        %p383 = pneg %p217
        %p384 = pneg %p214
        %p385 = pneg %p243
        %p386 = pneg %p240
        %s387 = sand.u32 %s230, 1
        %s388 = scalar_lea.sflag [#allocation4], %s387
        %s389 = sand.u32 %s230, 1
        %s390 = smul.addr %s389, 8
        %s391 = scalar_lea.vmem [#allocation10], %s390
        %v393 = vld [vmem:[%s345] sm:$0xff]
        %v394 = vpack.c.bf16 %v393, %v393
        %v395 = vld [vmem:[#allocation5] sm:$0xf]
        %v396 = vld [vmem:[#allocation5 + $0x4] sm:$0xf]
        %v397 = vld [vmem:[#allocation5 + $0x8] sm:$0xf]
        %v398 = vld [vmem:[#allocation5 + $0xc] sm:$0xf]
        %v399 = vld [vmem:[%s4] sm:$0x1]
        %v401 = vlaneseq
        %v402 = vshrl.u32 %v401, 7
        %v403 = vsub.s32 0, %v402
        %v404 = vrot.slane %v399, %v403
        %v410 = vunpack.c.l.b16 %v395
        %v411 = vunpack.c.l.b16 %v396
        %v412 = vunpack.c.l.b16 %v397
        %v413 = vunpack.c.l.b16 %v398
        %v414 = vpack.c.b16 %v411, %v410
        %v415 = vpack.c.b16 %v413, %v412
        %vm418 = vcmask 261120
        %v420 = vsel %vm418, %v394, 0
        %422 = vmatprep.subr.bf16.mxu0 0
        %423 = vmatpush1.bf16.msra.mxu0 %v414
        %424 = vmatprep.subr.bf16.mxu0 0
        %425 = vmatpush1.bf16.msra.mxu0 %v415
        %426 = vmatprep.subr.bf16.mxu0 0
        %427 = vmatpush1.bf16.msra.mxu0 0
        %428 = vmatprep.subr.bf16.mxu0 0
        %429 = vmatpush1.bf16.msra.mxu0 0
        %430 = vmatprep.subr.bf16.mxu0 0
        %431 = vmatpush1.bf16.msra.mxu0 0
        %432 = vmatprep.subr.bf16.mxu0 0
        %433 = vmatpush1.bf16.msra.mxu0 0
        %434 = vmatprep.subr.bf16.mxu0 0
        %435 = vmatpush1.bf16.msra.mxu0 0
        %436 = vmatprep.subr.bf16.mxu0 0
        %437 = vmatpush1.bf16.msra.mxu0 0
        %438 = vmatprep.subr.bf16.mxu0 0
        %439 = vmatpush1.bf16.msra.mxu0 0
        %440 = vmatprep.subr.bf16.mxu0 0
        %441 = vmatpush1.bf16.msra.mxu0 0
        %442 = vmatprep.subr.bf16.mxu0 0
        %443 = vmatpush1.bf16.msra.mxu0 0
        %444 = vmatprep.subr.bf16.mxu0 0
        %445 = vmatpush1.bf16.msra.mxu0 0
        %446 = vmatprep.subr.bf16.mxu0 0
        %447 = vmatpush1.bf16.msra.mxu0 0
        %448 = vmatprep.subr.bf16.mxu0 0
        %449 = vmatpush1.bf16.msra.mxu0 0
        %450 = vmatprep.subr.bf16.mxu0 0
        %451 = vmatpush1.bf16.msra.mxu0 0
        %452 = vmatprep.subr.bf16.mxu0 0
        %453 = vmatpush1.bf16.msra.mxu0 0
        %454 = vmatprep.mubr.bf16.mxu0 0
        %455 = vmatmul.mubr.bf16.gmra.mrb[0].mxu0 %v420
        %v456 = vpop.f32.mrb[0].mxu0
        %v457 = vadd.f32 %v404, %v456
        %v458 = vpop.f32.mrb[0].mxu0
        %v459 = vpop.f32.mrb[0].mxu0
        %v460 = vpop.f32.mrb[0].mxu0
        %461 = vdwg.mxu0
        %v462 = vld [vmem:[#allocation7] sm:$0xf]
        %v463 = vld [vmem:[#allocation7 + $0x4] sm:$0xf]
        %v464 = vld [vmem:[#allocation7 + $0x8] sm:$0xf]
        %v465 = vld [vmem:[#allocation7 + $0xc] sm:$0xf]
        %v466 = vld [vmem:[%s5] sm:$0x1]
        %v468 = vlaneseq
        %v469 = vshrl.u32 %v468, 7
        %v470 = vsub.s32 0, %v469
        %v471 = vrot.slane %v466, %v470
        %v477 = vunpack.c.l.b16 %v462
        %v478 = vunpack.c.l.b16 %v463
        %v479 = vunpack.c.l.b16 %v464
        %v480 = vunpack.c.l.b16 %v465
        %v481 = vpack.c.b16 %v478, %v477
        %v482 = vpack.c.b16 %v480, %v479
        %485 = vmatprep.subr.bf16.mxu0 0
        %486 = vmatpush1.bf16.msra.mxu0 %v481
        %487 = vmatprep.subr.bf16.mxu0 0
        %488 = vmatpush1.bf16.msra.mxu0 %v482
        %489 = vmatprep.subr.bf16.mxu0 0
        %490 = vmatpush1.bf16.msra.mxu0 0
        %491 = vmatprep.subr.bf16.mxu0 0
        %492 = vmatpush1.bf16.msra.mxu0 0
        %493 = vmatprep.subr.bf16.mxu0 0
        %494 = vmatpush1.bf16.msra.mxu0 0
        %495 = vmatprep.subr.bf16.mxu0 0
        %496 = vmatpush1.bf16.msra.mxu0 0
        %497 = vmatprep.subr.bf16.mxu0 0
        %498 = vmatpush1.bf16.msra.mxu0 0
        %499 = vmatprep.subr.bf16.mxu0 0
        %500 = vmatpush1.bf16.msra.mxu0 0
        %501 = vmatprep.subr.bf16.mxu0 0
        %502 = vmatpush1.bf16.msra.mxu0 0
        %503 = vmatprep.subr.bf16.mxu0 0
        %504 = vmatpush1.bf16.msra.mxu0 0
        %505 = vmatprep.subr.bf16.mxu0 0
        %506 = vmatpush1.bf16.msra.mxu0 0
        %507 = vmatprep.subr.bf16.mxu0 0
        %508 = vmatpush1.bf16.msra.mxu0 0
        %509 = vmatprep.subr.bf16.mxu0 0
        %510 = vmatpush1.bf16.msra.mxu0 0
        %511 = vmatprep.subr.bf16.mxu0 0
        %512 = vmatpush1.bf16.msra.mxu0 0
        %513 = vmatprep.subr.bf16.mxu0 0
        %514 = vmatpush1.bf16.msra.mxu0 0
        %515 = vmatprep.subr.bf16.mxu0 0
        %516 = vmatpush1.bf16.msra.mxu0 0
        %517 = vmatprep.mubr.bf16.mxu0 0
        %518 = vmatmul.mubr.bf16.gmra.mrb[0].mxu0 %v420
        %v519 = vpop.f32.mrb[0].mxu0
        %v520 = vadd.f32 %v471, %v519
        %v521 = vpop.f32.mrb[0].mxu0
        %v522 = vpop.f32.mrb[0].mxu0
        %v523 = vpop.f32.mrb[0].mxu0
        %524 = vdwg.mxu0
        %v525 = vld [vmem:[#allocation8] sm:$0xf]
        %v526 = vld [vmem:[#allocation8 + $0x4] sm:$0xf]
        %v527 = vld [vmem:[#allocation8 + $0x8] sm:$0xf]
        %v528 = vld [vmem:[#allocation8 + $0xc] sm:$0xf]
        %v529 = vld [vmem:[%s6] sm:$0x1]
        %v531 = vlaneseq
        %v532 = vshrl.u32 %v531, 7
        %v533 = vsub.s32 0, %v532
        %v534 = vrot.slane %v529, %v533
        %v540 = vunpack.c.l.b16 %v525
        %v541 = vunpack.c.l.b16 %v526
        %v542 = vunpack.c.l.b16 %v527
        %v543 = vunpack.c.l.b16 %v528
        %v544 = vpack.c.b16 %v541, %v540
        %v545 = vpack.c.b16 %v543, %v542
        %548 = vmatprep.subr.bf16.mxu0 0
        %549 = vmatpush1.bf16.msra.mxu0 %v544
        %550 = vmatprep.subr.bf16.mxu0 0
        %551 = vmatpush1.bf16.msra.mxu0 %v545
        %552 = vmatprep.subr.bf16.mxu0 0
        %553 = vmatpush1.bf16.msra.mxu0 0
        %554 = vmatprep.subr.bf16.mxu0 0
        %555 = vmatpush1.bf16.msra.mxu0 0
        %556 = vmatprep.subr.bf16.mxu0 0
        %557 = vmatpush1.bf16.msra.mxu0 0
        %558 = vmatprep.subr.bf16.mxu0 0
        %559 = vmatpush1.bf16.msra.mxu0 0
        %560 = vmatprep.subr.bf16.mxu0 0
        %561 = vmatpush1.bf16.msra.mxu0 0
        %562 = vmatprep.subr.bf16.mxu0 0
        %563 = vmatpush1.bf16.msra.mxu0 0
        %564 = vmatprep.subr.bf16.mxu0 0
        %565 = vmatpush1.bf16.msra.mxu0 0
        %566 = vmatprep.subr.bf16.mxu0 0
        %567 = vmatpush1.bf16.msra.mxu0 0
        %568 = vmatprep.subr.bf16.mxu0 0
        %569 = vmatpush1.bf16.msra.mxu0 0
        %570 = vmatprep.subr.bf16.mxu0 0
        %571 = vmatpush1.bf16.msra.mxu0 0
        %572 = vmatprep.subr.bf16.mxu0 0
        %573 = vmatpush1.bf16.msra.mxu0 0
        %574 = vmatprep.subr.bf16.mxu0 0
        %575 = vmatpush1.bf16.msra.mxu0 0
        %576 = vmatprep.subr.bf16.mxu0 0
        %577 = vmatpush1.bf16.msra.mxu0 0
        %578 = vmatprep.subr.bf16.mxu0 0
        %579 = vmatpush1.bf16.msra.mxu0 0
        %580 = vmatprep.mubr.bf16.mxu0 0
        %581 = vmatmul.mubr.bf16.gmra.mrb[0].mxu0 %v420
        %v582 = vpop.f32.mrb[0].mxu0
        %v583 = vadd.f32 %v534, %v582
        %v584 = vpop.f32.mrb[0].mxu0
        %v585 = vpop.f32.mrb[0].mxu0
        %v586 = vpop.f32.mrb[0].mxu0
        %587 = vdwg.mxu0
        %v588 = vpack.c.bf16 %v457, %v457
        %v589 = vpack.c.bf16 %v520, %v520
        %v590 = vpack.c.bf16 %v583, %v583
        %v592 = vsel %vm418, %v588, 0
        %v595 = vsel %vm418, %v589, 0
        %597 = vmatprep.subr.bf16.mxu0 0
        %598 = vmatpush1.bf16.xpose.msra.mxu0 %v595
        %599 = vmatprep.subr.bf16.mxu0 0
        %600 = vmatpush1.bf16.xpose.msra.mxu0 0
        %601 = vmatprep.subr.bf16.mxu0 0
        %602 = vmatpush1.bf16.xpose.msra.mxu0 0
        %603 = vmatprep.subr.bf16.mxu0 0
        %604 = vmatpush1.bf16.xpose.msra.mxu0 0
        %605 = vmatprep.subr.bf16.mxu0 0
        %606 = vmatpush1.bf16.xpose.msra.mxu0 0
        %607 = vmatprep.subr.bf16.mxu0 0
        %608 = vmatpush1.bf16.xpose.msra.mxu0 0
        %609 = vmatprep.subr.bf16.mxu0 0
        %610 = vmatpush1.bf16.xpose.msra.mxu0 0
        %611 = vmatprep.subr.bf16.mxu0 0
        %612 = vmatpush1.bf16.xpose.msra.mxu0 0
        %613 = vmatprep.subr.bf16.mxu0 0
        %614 = vmatpush1.bf16.xpose.msra.mxu0 0
        %615 = vmatprep.subr.bf16.mxu0 0
        %616 = vmatpush1.bf16.xpose.msra.mxu0 0
        %617 = vmatprep.subr.bf16.mxu0 0
        %618 = vmatpush1.bf16.xpose.msra.mxu0 0
        %619 = vmatprep.subr.bf16.mxu0 0
        %620 = vmatpush1.bf16.xpose.msra.mxu0 0
        %621 = vmatprep.subr.bf16.mxu0 0
        %622 = vmatpush1.bf16.xpose.msra.mxu0 0
        %623 = vmatprep.subr.bf16.mxu0 0
        %624 = vmatpush1.bf16.xpose.msra.mxu0 0
        %625 = vmatprep.subr.bf16.mxu0 0
        %626 = vmatpush1.bf16.xpose.msra.mxu0 0
        %627 = vmatprep.subr.bf16.mxu0 0
        %628 = vmatpush1.bf16.xpose.msra.mxu0 0
        %629 = vmatprep.mubr.bf16.mxu0 0
        %630 = vmatmul.mubr.bf16.gmra.mrb[0].mxu0 %v592
        %v631 = vpop.f32.mrb[0].mxu0
        %v632 = vadd.f32 0.0, %v631
        %v633 = vpop.f32.mrb[0].mxu0
        %v634 = vpop.f32.mrb[0].mxu0
        %v635 = vpop.f32.mrb[0].mxu0
        %636 = vdwg.mxu0
        %vm637 = vcmask 64512
        %v638 = vsel %vm637, %v632, -inf
        %639 = vmax.xlane.f32.xlu0 %v638
        %v640 = vpop.xlane.xlu0 %639
        %v641 = vsub.f32 %v632, %v640
        %v642 = vmul.f32 %v641, 1.442695
        %v643 = vpow.pop %v642
        %v644 = vsel %vm637, %v643, 0.0
        %645 = vadd.xlane.f32.xlu0 %v644
        %v646 = vpop.xlane.xlu0 %645
        %v647 = vpack.c.bf16 %v643, %v643
        %v649 = vsel %vm637, %v647, 0
        %vm651 = vcmask 1043456
        %v653 = vsel %vm651, %v590, 0
        %655 = vmatprep.subr.bf16.mxu0 0
        %656 = vmatpush1.bf16.msra.mxu0 %v653
        %657 = vmatprep.subr.bf16.mxu0 0
        %658 = vmatpush1.bf16.msra.mxu0 0
        %659 = vmatprep.subr.bf16.mxu0 0
        %660 = vmatpush1.bf16.msra.mxu0 0
        %661 = vmatprep.subr.bf16.mxu0 0
        %662 = vmatpush1.bf16.msra.mxu0 0
        %663 = vmatprep.subr.bf16.mxu0 0
        %664 = vmatpush1.bf16.msra.mxu0 0
        %665 = vmatprep.subr.bf16.mxu0 0
        %666 = vmatpush1.bf16.msra.mxu0 0
        %667 = vmatprep.subr.bf16.mxu0 0
        %668 = vmatpush1.bf16.msra.mxu0 0
        %669 = vmatprep.subr.bf16.mxu0 0
        %670 = vmatpush1.bf16.msra.mxu0 0
        %671 = vmatprep.subr.bf16.mxu0 0
        %672 = vmatpush1.bf16.msra.mxu0 0
        %673 = vmatprep.subr.bf16.mxu0 0
        %674 = vmatpush1.bf16.msra.mxu0 0
        %675 = vmatprep.subr.bf16.mxu0 0
        %676 = vmatpush1.bf16.msra.mxu0 0
        %677 = vmatprep.subr.bf16.mxu0 0
        %678 = vmatpush1.bf16.msra.mxu0 0
        %679 = vmatprep.subr.bf16.mxu0 0
        %680 = vmatpush1.bf16.msra.mxu0 0
        %681 = vmatprep.subr.bf16.mxu0 0
        %682 = vmatpush1.bf16.msra.mxu0 0
        %683 = vmatprep.subr.bf16.mxu0 0
        %684 = vmatpush1.bf16.msra.mxu0 0
        %685 = vmatprep.subr.bf16.mxu0 0
        %686 = vmatpush1.bf16.msra.mxu0 0
        %687 = vmatprep.mubr.bf16.mxu0 0
        %688 = vmatmul.mubr.bf16.gmra.mrb[0].mxu0 %v649
        %v689 = vpop.f32.mrb[0].mxu0
        %v690 = vadd.f32 0.0, %v689
        %v691 = vpop.f32.mrb[0].mxu0
        %v692 = vpop.f32.mrb[0].mxu0
        %v693 = vpop.f32.mrb[0].mxu0
        %694 = vdwg.mxu0
        %v695 = vrcp.pop %v646
        %v696 = vmul.f32 %v690, %v695
        %v697 = vpack.c.bf16 %v696, %v696
        %v698 = vld [vmem:[%s7] sm:$0xf]
        %v699 = vld [vmem:[%s7 + $0x4] sm:$0xf]
        %v700 = vld [vmem:[%s7 + $0x8] sm:$0xf]
        %v701 = vld [vmem:[%s7 + $0xc] sm:$0xf]
        %v702 = vld [vmem:[%s8] sm:$0x1]
        %v704 = vlaneseq
        %v705 = vshrl.u32 %v704, 7
        %v706 = vsub.s32 0, %v705
        %v707 = vrot.slane %v702, %v706
        %v713 = vunpack.c.l.b16 %v698
        %v714 = vunpack.c.l.b16 %v699
        %v715 = vunpack.c.l.b16 %v700
        %v716 = vunpack.c.l.b16 %v701
        %v717 = vpack.c.b16 %v714, %v713
        %v718 = vpack.c.b16 %v716, %v715
        %v722 = vsel %vm418, %v697, 0
        %724 = vmatprep.subr.bf16.mxu0 0
        %725 = vmatpush1.bf16.msra.mxu0 %v717
        %726 = vmatprep.subr.bf16.mxu0 0
        %727 = vmatpush1.bf16.msra.mxu0 %v718
        %728 = vmatprep.subr.bf16.mxu0 0
        %729 = vmatpush1.bf16.msra.mxu0 0
        %730 = vmatprep.subr.bf16.mxu0 0
        %731 = vmatpush1.bf16.msra.mxu0 0
        %732 = vmatprep.subr.bf16.mxu0 0
        %733 = vmatpush1.bf16.msra.mxu0 0
        %734 = vmatprep.subr.bf16.mxu0 0
        %735 = vmatpush1.bf16.msra.mxu0 0
        %736 = vmatprep.subr.bf16.mxu0 0
        %737 = vmatpush1.bf16.msra.mxu0 0
        %738 = vmatprep.subr.bf16.mxu0 0
        %739 = vmatpush1.bf16.msra.mxu0 0
        %740 = vmatprep.subr.bf16.mxu0 0
        %741 = vmatpush1.bf16.msra.mxu0 0
        %742 = vmatprep.subr.bf16.mxu0 0
        %743 = vmatpush1.bf16.msra.mxu0 0
        %744 = vmatprep.subr.bf16.mxu0 0
        %745 = vmatpush1.bf16.msra.mxu0 0
        %746 = vmatprep.subr.bf16.mxu0 0
        %747 = vmatpush1.bf16.msra.mxu0 0
        %748 = vmatprep.subr.bf16.mxu0 0
        %749 = vmatpush1.bf16.msra.mxu0 0
        %750 = vmatprep.subr.bf16.mxu0 0
        %751 = vmatpush1.bf16.msra.mxu0 0
        %752 = vmatprep.subr.bf16.mxu0 0
        %753 = vmatpush1.bf16.msra.mxu0 0
        %754 = vmatprep.subr.bf16.mxu0 0
        %755 = vmatpush1.bf16.msra.mxu0 0
        %756 = vmatprep.mubr.bf16.mxu0 0
        %757 = vmatmul.mubr.bf16.gmra.mrb[0].mxu0 %v722
        %v758 = vpop.f32.mrb[0].mxu0
        %v759 = vadd.f32 %v707, %v758
        %v760 = vpop.f32.mrb[0].mxu0
        %v761 = vpop.f32.mrb[0].mxu0
        %v762 = vpop.f32.mrb[0].mxu0
        %763 = vdwg.mxu0
        %v764 = vadd.f32 %v759, %v393
        %765 = vst.msk [vmem:[%s391] sm:$0xff] %vm418, %v764
        %s766 = sand.u32 %s230, 1
        %s767 = scalar_lea.sflag [#allocation4], %s766
        %s768 = sand.u32 %s230, 1
        %s769 = smul.addr %s768, 8
        %s770 = scalar_lea.vmem [#allocation10], %s769
        // Predicated region
        $region73: #{tpu_custom_call.1} parent=55 // pred_check
          %p771 = pneg %p240
        $region74: #{tpu_custom_call.1} parent=55 // pred_check_branch
          %773 = sbr.rel (%p771) target = $region76
        $region75: #{tpu_custom_call.1} parent=55 // pred_region
          %s775 = ssub.s32 128, 128
          %776 = vsyncadd %s767, %s775
          %s777 = smul.addr %s28, 128
          %s778 = scalar_lea.hbm %s9, %s777
          %s780 = sshll.u32 %s770, 4
          %s781 = int_to_ptr.vmem [resolvable:$true] %s780
          %783 = dma.vmem_to_hbm [thread:$0]  %s781, 128, %s778, %s767
        $region76: #{tpu_custom_call.1} parent=55 // pred_fallthru
          _
      $region56: #{tpu_custom_call.1} parent=5 // pred_fallthru
        _
      %p784 = scmp.le.s32.totalorder 2, %s23
      // Predicated region
      $region77: #{tpu_custom_call.1} parent=5 // pred_check
        %p785 = pneg %p784
      $region78: #{tpu_custom_call.1} parent=5 // pred_check_branch
        %787 = sbr.rel (%p785) target = $region80
      $region79: #{tpu_custom_call.1} parent=5 // pred_region
        %s788 = ssub.s32 %s23, 2
        // Predicated region
        $region81: #{tpu_custom_call.1} parent=79 // pred_check
          %p789 = pneg %p246
        $region82: #{tpu_custom_call.1} parent=79 // pred_check_branch
          %791 = sbr.rel (%p789) target = $region84
        $region83: #{tpu_custom_call.1} parent=79 // pred_region
          %s792 = sand.u32 %s231, 1
          %s793 = scalar_lea.sflag [#allocation4], %s792
          %s794 = sand.u32 %s231, 1
          %s795 = smul.addr %s794, 8
          %s796 = scalar_lea.vmem [#allocation10], %s795
          %797 = dma.done %s793, 128
        $region84: #{tpu_custom_call.1} parent=79 // pred_fallthru
          _
      $region80: #{tpu_custom_call.1} parent=5 // pred_fallthru
        _
    $region6: #{tpu_custom_call.1} parent=1 // loop_footer
      %s27 = sadd.s32 1, %s23
    $region7: #{tpu_custom_call.1} parent=1 // loop_footer_branch
      %22 = sbr.rel target = $region3
    $region8: #{tpu_custom_call.1} parent=1 // loop_exit
      _
    %798 = vsyncpa [#allocation3], 1
    %s799 = scalar_lea.sflag [#allocation3], 1
    %800 = vsyncpa %s799, 1
    %801 = vsyncpa [#allocation6], 1
    %802 = vsyncpa [#allocation9], 1
    %803 = vsyncpa [#allocation4], 1
    %s804 = scalar_lea.sflag [#allocation4], 1
    %805 = vsyncpa %s804, 1

</llo_original>
